<compile_context>
chip_gen: v7x
topology: tpu7x:2x2x1
jax: 0.10.0
libtpu: 0.0.40
codegen_flags: <defaults>
</compile_context>

<pallas_src>
import jax
import jax.numpy as jnp
from jax.experimental import pallas as pl
from jax.experimental.pallas import tpu as pltpu


# ----------------------------------------------------------------------------
# Kernel 1: fused "small" columns (global / scaling linear / small embedding /
#           patch projection).  Gridless: every operand is one whole-array
#           VMEM block, so all weights + activations stay resident.
# ----------------------------------------------------------------------------

def _fused_embed_kernel(price_ref, cat_ref, gtok_ref, pw_ref, pb_ref, ctab_ref,
                        patch_ref, iw_ref, ib_ref,
                        g_out_ref, p_out_ref, c_out_ref, i_out_ref):
    m, d = g_out_ref.shape
    num_cls = ctab_ref.shape[0]

    # 'global': broadcast the learned token to every (batch, step) position.
    g_out_ref[...] = jnp.broadcast_to(gtok_ref[...], (m, d))

    # scaling col: nn.Linear(1, D)  ==  x * w + b   (pure VPU broadcast math).
    p_out_ref[...] = price_ref[...] * pw_ref[...] + pb_ref[...]

    # embedding col (tiny table, num_cls rows): one-hot(ids) @ table on the MXU.
    ids = cat_ref[...]                                            # (m, 1) int32
    iota = jax.lax.broadcasted_iota(jnp.int32, (m, num_cls), 1)   # (m, num_cls)
    onehot = (ids == iota).astype(jnp.float32)
    c_out_ref[...] = jnp.dot(onehot, ctab_ref[...],
                             preferred_element_type=jnp.float32)

    # img col: PatchEmbed projection  ==  patches @ W + b  on the MXU.
    i_out_ref[...] = (jnp.dot(patch_ref[...], iw_ref[...],
                              preferred_element_type=jnp.float32)
                      + ib_ref[...])


def fused_embed(price, cat_ids, gtok, pw, pb, ctab, patches, iw, ib):
    m = price.shape[0]
    d = gtok.shape[1]
    mi = patches.shape[0]
    out_shape = (
        jax.ShapeDtypeStruct((m, d), jnp.float32),    # 'global'
        jax.ShapeDtypeStruct((m, d), jnp.float32),    # scaling col
        jax.ShapeDtypeStruct((m, d), jnp.float32),    # embedding col
        jax.ShapeDtypeStruct((mi, d), jnp.float32),   # img col (patch tokens)
    )
    # Gridless call: whole arrays as single VMEM blocks (everything is tiny),
    # one kernel launch for the entire "small" part of the module.
    return pl.pallas_call(_fused_embed_kernel, out_shape=out_shape)(
        price, cat_ids, gtok, pw, pb, ctab, patches, iw, ib)


# ----------------------------------------------------------------------------
# Kernel 2: big-vocab embedding lookup (nn.Embedding(30522, D)).
#           Scalar-prefetch gather: the token ids live in SMEM and drive a
#           data-dependent index_map, so only the needed (1, D) rows are
#           DMA'd from HBM (pipelined over the token grid).
# ----------------------------------------------------------------------------

def _gather_row_kernel(ids_ref, row_ref, out_ref):
    del ids_ref  # consumed by the index_maps, not the body
    out_ref[...] = row_ref[...]


def embedding_gather(table, ids):
    """out[t, :] = table[ids[t], :].   table: (V, D) f32,  ids: (T,) int32."""
    t_tokens = ids.shape[0]
    _, d = table.shape
    grid_spec = pltpu.PrefetchScalarGridSpec(
        num_scalar_prefetch=1,                 # ids -> SMEM, feeds the index_maps
        grid=(t_tokens,),
        in_specs=[pl.BlockSpec((1, d), lambda t, ids_ref: (ids_ref[t], 0))],
        out_specs=pl.BlockSpec((1, d), lambda t, ids_ref: (t, 0)),
    )
    return pl.pallas_call(
        _gather_row_kernel,
        grid_spec=grid_spec,
        out_shape=jax.ShapeDtypeStruct((t_tokens, d), table.dtype),
        compiler_params=pltpu.CompilerParams(dimension_semantics=("arbitrary",)),
    )(ids, table)


# ----------------------------------------------------------------------------
# PatchEmbed helper: pixel -> patch relayout (feature order (c, u, v) to match
# Conv2d(3, D, P, stride=P) expressed as a matmul).  Pure relayout, done in XLA.
# ----------------------------------------------------------------------------

def patchify(img, patch_size):
    b, c, h, w = img.shape
    p = patch_size
    gh, gw = h // p, w // p
    x = img.reshape(b, c, gh, p, gw, p)
    x = jnp.transpose(x, (0, 2, 4, 1, 3, 5))          # (B, gh, gw, C, P, P)
    return x.reshape(b, gh * gw, c * p * p)           # (B, num_patches, C*P*P)


# ----------------------------------------------------------------------------
# Config / params
# ----------------------------------------------------------------------------

class Config:
    target_col = ["price"]
    temporal_cols = ["price", "category"]
    scaling_cols = ["price"]
    embedding_cols = ["category"]
    img_cols = ["image"]
    nlp_cols = ["text"]
    patch_size = 16
    img_size = 224


LABEL_ENCODER_NUM_CLS = {"category": 5}
NLP_VOCAB = 30522
D_MODEL = 32


def init_embedding_params(key, cfg, d_model):
    d = d_model
    p = cfg.patch_size
    ks = jax.random.split(key, 7)
    return {
        # torch.rand(1, 1, d_model)
        "global_token": jax.random.uniform(ks[0], (1, d), jnp.float32),
        # nn.Linear(1, d_model): weight stored pre-transposed as (1, D)
        "price": {"w": jax.random.normal(ks[1], (1, d), jnp.float32) * 0.02,
                  "b": jax.random.normal(ks[2], (1, d), jnp.float32) * 0.02},
        # nn.Embedding(num_cls, d_model)
        "category": {"table": jax.random.normal(
            ks[3], (LABEL_ENCODER_NUM_CLS["category"], d), jnp.float32) * 0.02},
        # PatchEmbed: Conv2d(3, D, P, stride=P) expressed as (3*P*P, D) matmul
        "image": {"w": jax.random.normal(ks[4], (3 * p * p, d), jnp.float32) * 0.02,
                  "b": jax.random.normal(ks[5], (1, d), jnp.float32) * 0.02},
        # nn.Embedding(30522, d_model)
        "text": {"table": jax.random.normal(ks[6], (NLP_VOCAB, d), jnp.float32) * 0.02},
    }


# ----------------------------------------------------------------------------
# Embedding.forward
# ----------------------------------------------------------------------------

def embedding_forward(params, data_dict, cfg, d_model):
    d = d_model
    target = cfg.target_col[0]
    b, s = data_dict[target].shape[:-1]
    m = b * s

    # img column: patchify in XLA (pure relayout), project in the fused kernel.
    patches = patchify(data_dict["image"], cfg.patch_size)   # (B, Np, 3*P*P)
    bp, np_, kp = patches.shape
    patches2 = patches.reshape(bp * np_, kp)

    price = data_dict["price"].reshape(m, 1).astype(jnp.float32)
    cat_ids = data_dict["category"].reshape(m, 1).astype(jnp.int32)

    g_out, p_out, c_out, i_out = fused_embed(
        price, cat_ids,
        params["global_token"], params["price"]["w"], params["price"]["b"],
        params["category"]["table"],
        patches2, params["image"]["w"], params["image"]["b"])

    # nlp column: row gather from the big vocab table (only needed rows move).
    bt, st = data_dict["text"].shape
    text_ids = data_dict["text"].reshape(-1).astype(jnp.int32)
    t_out = embedding_gather(params["text"]["table"], text_ids)

    return {
        "global": g_out.reshape(b, s, d),
        "price": p_out.reshape(b, s, d),
        "category": c_out.reshape(b, s, d),
        "image": i_out.reshape(bp, np_, d),
        "text": t_out.reshape(bt, st, d),
    }


# ----------------------------------------------------------------------------
# main
# ----------------------------------------------------------------------------

if __name__ == "__main__":
    cfg = Config()
    key = jax.random.PRNGKey(0)
    kparams, kdata = jax.random.split(key)
    params = init_embedding_params(kparams, cfg, D_MODEL)

    B, S, S_TEXT = 2, 8, 16
    k1, k2, k3, k4 = jax.random.split(kdata, 4)
    data_dict = {
        "price": jax.random.normal(k1, (B, S, 1), jnp.float32),
        "category": jax.random.randint(
            k2, (B, S), 0, LABEL_ENCODER_NUM_CLS["category"], jnp.int32),
        "image": jax.random.normal(k3, (B, 3, cfg.img_size, cfg.img_size), jnp.float32),
        "text": jax.random.randint(k4, (B, S_TEXT), 0, NLP_VOCAB, jnp.int32),
    }

    result = embedding_forward(params, data_dict, cfg, D_MODEL)
    result = jax.block_until_ready(result)

    NP = (cfg.img_size // cfg.patch_size) ** 2
    expected = {
        "global": (B, S, D_MODEL),
        "price": (B, S, D_MODEL),
        "category": (B, S, D_MODEL),
        "image": (B, NP, D_MODEL),
        "text": (B, S_TEXT, D_MODEL),
    }
    for name, shape in expected.items():
        assert result[name].shape == shape, (name, result[name].shape, shape)
        assert bool(jnp.all(jnp.isfinite(result[name]))), name

    # Pure-JAX reference check of the forward-pass semantics.
    refs = {
        "global": jnp.broadcast_to(params["global_token"][None, :, :], (B, S, D_MODEL)),
        "price": data_dict["price"] * params["price"]["w"][0] + params["price"]["b"][0],
        "category": params["category"]["table"][data_dict["category"]],
        "image": jnp.einsum("bpk,kd->bpd",
                            patchify(data_dict["image"], cfg.patch_size),
                            params["image"]["w"],
                            precision=jax.lax.Precision.HIGHEST)
                 + params["image"]["b"][0],
        "text": params["text"]["table"][data_dict["text"]],
    }
    for name, ref in refs.items():
        atol = 5e-2 if name == "image" else 2e-3
        assert bool(jnp.allclose(result[name], ref, atol=atol, rtol=0.0)), name

    print("KERNEL_OK")
</pallas_src>

<mosaic_0001>
module attributes {stable_mosaic.version = 11 : i64} {
  func.func @_fused_embed_kernel(%arg0: memref<16x1xf32, #tpu.memory_space<vmem>>, %arg1: memref<16x1xi32, #tpu.memory_space<vmem>>, %arg2: memref<1x32xf32, #tpu.memory_space<vmem>>, %arg3: memref<1x32xf32, #tpu.memory_space<vmem>>, %arg4: memref<1x32xf32, #tpu.memory_space<vmem>>, %arg5: memref<5x32xf32, #tpu.memory_space<vmem>>, %arg6: memref<392x768xf32, #tpu.memory_space<vmem>>, %arg7: memref<768x32xf32, #tpu.memory_space<vmem>>, %arg8: memref<1x32xf32, #tpu.memory_space<vmem>>, %arg9: memref<16x32xf32, #tpu.memory_space<vmem>>, %arg10: memref<16x32xf32, #tpu.memory_space<vmem>>, %arg11: memref<16x32xf32, #tpu.memory_space<vmem>>, %arg12: memref<392x32xf32, #tpu.memory_space<vmem>>) attributes {dimension_semantics = [], scalar_prefetch = 0 : i64, scratch_operands = 0 : i64, tpu.core_type = #tpu.core_type<tc>} {
    %c0 = arith.constant 0 : index
    %c0_0 = arith.constant 0 : index
    %0 = vector.load %arg2[%c0, %c0_0] : memref<1x32xf32, #tpu.memory_space<vmem>>, vector<1x32xf32>
    %1 = vector.shape_cast %0 : vector<1x32xf32> to vector<1x32xf32>
    %2 = vector.broadcast %1 : vector<1x32xf32> to vector<16x32xf32>
    %c0_1 = arith.constant 0 : index
    %c0_2 = arith.constant 0 : index
    %3 = vector.load %arg9[%c0_1, %c0_2] : memref<16x32xf32, #tpu.memory_space<vmem>>, vector<16x32xf32>
    tpu.vector_store %arg9[%c0_1, %c0_2], %2 {strides = array<i32>} : memref<16x32xf32, #tpu.memory_space<vmem>>, vector<16x32xf32>,
    %c0_3 = arith.constant 0 : index
    %c0_4 = arith.constant 0 : index
    %4 = vector.load %arg0[%c0_3, %c0_4] : memref<16x1xf32, #tpu.memory_space<vmem>>, vector<16x1xf32>
    %c0_5 = arith.constant 0 : index
    %c0_6 = arith.constant 0 : index
    %5 = vector.load %arg3[%c0_5, %c0_6] : memref<1x32xf32, #tpu.memory_space<vmem>>, vector<1x32xf32>
    %6 = vector.broadcast %4 : vector<16x1xf32> to vector<16x32xf32>
    %7 = vector.broadcast %5 : vector<1x32xf32> to vector<16x32xf32>
    %8 = arith.mulf %6, %7 : vector<16x32xf32>
    %c0_7 = arith.constant 0 : index
    %c0_8 = arith.constant 0 : index
    %9 = vector.load %arg4[%c0_7, %c0_8] : memref<1x32xf32, #tpu.memory_space<vmem>>, vector<1x32xf32>
    %10 = vector.broadcast %9 : vector<1x32xf32> to vector<16x32xf32>
    %11 = arith.addf %8, %10 : vector<16x32xf32>
    %c0_9 = arith.constant 0 : index
    %c0_10 = arith.constant 0 : index
    %12 = vector.load %arg10[%c0_9, %c0_10] : memref<16x32xf32, #tpu.memory_space<vmem>>, vector<16x32xf32>
    tpu.vector_store %arg10[%c0_9, %c0_10], %11 {strides = array<i32>} : memref<16x32xf32, #tpu.memory_space<vmem>>, vector<16x32xf32>,
    %c0_11 = arith.constant 0 : index
    %c0_12 = arith.constant 0 : index
    %13 = vector.load %arg1[%c0_11, %c0_12] : memref<16x1xi32, #tpu.memory_space<vmem>>, vector<16x1xi32>
    %14 = tpu.iota {dimensions = array<i32: 1>} : vector<16x5xi32>
    %15 = vector.broadcast %13 : vector<16x1xi32> to vector<16x5xi32>
    %16 = arith.cmpi eq, %15, %14 : vector<16x5xi32>
    %17 = arith.extui %16 : vector<16x5xi1> to vector<16x5xi32>
    %18 = arith.sitofp %17 : vector<16x5xi32> to vector<16x5xf32>
    %c0_13 = arith.constant 0 : index
    %c0_14 = arith.constant 0 : index
    %19 = vector.load %arg5[%c0_13, %c0_14] : memref<5x32xf32, #tpu.memory_space<vmem>>, vector<5x32xf32>
    %cst = arith.constant dense<0.000000e+00> : vector<16x32xf32>
    %20 = tpu.matmul %18, %19, %cst {dimension_numbers = #tpu.dot_dimension_numbers<[1], [0], [0], [1], [0, 0, 1, 1], [], []>} : vector<16x5xf32>, vector<5x32xf32>, vector<16x32xf32> -> vector<16x32xf32>
    %c0_15 = arith.constant 0 : index
    %c0_16 = arith.constant 0 : index
    %21 = vector.load %arg11[%c0_15, %c0_16] : memref<16x32xf32, #tpu.memory_space<vmem>>, vector<16x32xf32>
    tpu.vector_store %arg11[%c0_15, %c0_16], %20 {strides = array<i32>} : memref<16x32xf32, #tpu.memory_space<vmem>>, vector<16x32xf32>,
    %c0_17 = arith.constant 0 : index
    %c0_18 = arith.constant 0 : index
    %22 = vector.load %arg6[%c0_17, %c0_18] : memref<392x768xf32, #tpu.memory_space<vmem>>, vector<392x768xf32>
    %c0_19 = arith.constant 0 : index
    %c0_20 = arith.constant 0 : index
    %23 = vector.load %arg7[%c0_19, %c0_20] : memref<768x32xf32, #tpu.memory_space<vmem>>, vector<768x32xf32>
    %cst_21 = arith.constant dense<0.000000e+00> : vector<392x32xf32>
    %24 = tpu.matmul %22, %23, %cst_21 {dimension_numbers = #tpu.dot_dimension_numbers<[1], [0], [0], [1], [0, 0, 1, 1], [], []>} : vector<392x768xf32>, vector<768x32xf32>, vector<392x32xf32> -> vector<392x32xf32>
    %c0_22 = arith.constant 0 : index
    %c0_23 = arith.constant 0 : index
    %25 = vector.load %arg8[%c0_22, %c0_23] : memref<1x32xf32, #tpu.memory_space<vmem>>, vector<1x32xf32>
    %26 = vector.broadcast %25 : vector<1x32xf32> to vector<392x32xf32>
    %27 = arith.addf %24, %26 : vector<392x32xf32>
    %c0_24 = arith.constant 0 : index
    %c0_25 = arith.constant 0 : index
    %28 = vector.load %arg12[%c0_24, %c0_25] : memref<392x32xf32, #tpu.memory_space<vmem>>, vector<392x32xf32>
    tpu.vector_store %arg12[%c0_24, %c0_25], %27 {strides = array<i32>} : memref<392x32xf32, #tpu.memory_space<vmem>>, vector<392x32xf32>,
    return
  }
}

</mosaic_0001>

<llo_original>
// kernel: tpu_custom_call.1
$region0: #{tpu_custom_call.1}
  #allocation0 [shape = 'u32[]', space=smem, size = 0x4, offset = 0x4, fixed_abs, tag = 'smem constant byte address 0x4 - core index']
  #allocation1 [shape = 'u32[144,128]{1,0:T(1,128)}', space=vmem, size = 0x12000, scoped, tag = 'internal scratch']
  %s0 = inlined_call_operand.vmem [shape: f32[16,1], index: 0, kind: input, shape index: {}]
  %s1 = inlined_call_operand.vmem [shape: s32[16,1], index: 1, kind: input, shape index: {}]
  %s2 = inlined_call_operand.hbm [shape: f32[1,32], index: 2, kind: input, shape index: {}]
  %s3 = inlined_call_operand.hbm [shape: f32[1,32], index: 3, kind: input, shape index: {}]
  %s4 = inlined_call_operand.hbm [shape: f32[1,32], index: 4, kind: input, shape index: {}]
  %s5 = inlined_call_operand.hbm [shape: f32[5,32], index: 5, kind: input, shape index: {}]
  %s6 = inlined_call_operand.hbm [shape: f32[392,768], index: 6, kind: input, shape index: {}]
  %s7 = inlined_call_operand.vmem [shape: f32[768,32], index: 7, kind: input, shape index: {}]
  %s8 = inlined_call_operand.hbm [shape: f32[1,32], index: 8, kind: input, shape index: {}]
  %s9 = inlined_call_operand.hbm [shape: f32[16,32], index: 9, kind: output, shape index: {0}]
  %s10 = inlined_call_operand.hbm [shape: f32[16,32], index: 10, kind: output, shape index: {1}]
  %s11 = inlined_call_operand.hbm [shape: f32[16,32], index: 11, kind: output, shape index: {2}]
  %s12 = inlined_call_operand.vmem [shape: f32[392,32], index: 12, kind: output, shape index: {3}]
  %13 = xla_tuple %s9, %s10, %s11, %s12
  %s14 = sld [smem:[#allocation0]]
  $region94: #{tpu_custom_call.1} parent=0
    _
  %s16 = ssub.s32 1, %s14
  %s17 = scalar_select 0, %s16, %s14
  $region1: #{tpu_custom_call.1} parent=0
    #allocation2 [shape = 'u8[512]{0}', space=vmem, size = 0x400, scoped, tag = 'input window, operand 2, single buffered']
    #allocation3 [shape = 's32[1]{0}', space=sflag, size = 0x4, scoped, tag = 'scoped memory for tpu_custom_call.1']
    #allocation4 [shape = 's32[1]{0}', space=sflag, size = 0x4, scoped, tag = 'scoped memory for tpu_custom_call.1']
    #allocation5 [shape = 'u8[512]{0}', space=vmem, size = 0x400, scoped, tag = 'input window, operand 3, single buffered']
    #allocation6 [shape = 's32[1]{0}', space=sflag, size = 0x4, scoped, tag = 'scoped memory for tpu_custom_call.1']
    #allocation7 [shape = 'u8[512]{0}', space=vmem, size = 0x400, scoped, tag = 'input window, operand 4, single buffered']
    #allocation8 [shape = 'u8[4096]{0}', space=vmem, size = 0x1000, scoped, tag = 'input window, operand 5, single buffered']
    #allocation9 [shape = 's32[1]{0}', space=sflag, size = 0x4, scoped, tag = 'scoped memory for tpu_custom_call.1']
    #allocation10 [shape = 'u8[1204224]{0}', space=vmem, size = 0x126000, scoped, tag = 'input window, operand 6, single buffered']
    #allocation11 [shape = 'u8[512]{0}', space=vmem, size = 0x400, scoped, tag = 'input window, operand 8, single buffered']
    #allocation12 [shape = 's32[1]{0}', space=sflag, size = 0x4, scoped, tag = 'scoped memory for tpu_custom_call.1']
    #allocation13 [shape = 'u8[8192]{0}', space=vmem, size = 0x2000, scoped, tag = 'output window, operand 0, single buffered']
    #allocation14 [shape = 'u8[8192]{0}', space=vmem, size = 0x2000, scoped, tag = 'output window, operand 1, single buffered']
    #allocation15 [shape = 's32[1]{0}', space=sflag, size = 0x4, scoped, tag = 'scoped memory for tpu_custom_call.1']
    #allocation16 [shape = 'u8[8192]{0}', space=vmem, size = 0x2000, scoped, tag = 'output window, operand 2, single buffered']
    %18 = vsyncpa [#allocation3], 0
    %19 = vsyncpa [#allocation6], 0
    %20 = vsyncpa [#allocation9], 0
    %21 = vsyncpa [#allocation12], 0
    %22 = vsyncpa [#allocation4], 0
    %23 = vsyncpa [#allocation15], 0
    // Predicated region
    $region2: #{tpu_custom_call.1} parent=1 // pred_check
      _
    $region3: #{tpu_custom_call.1} parent=1 // pred_check_branch
      %25 = sbr.rel (0) target = $region5
    $region4: #{tpu_custom_call.1} parent=1 // pred_region
      _
    $region5: #{tpu_custom_call.1} parent=1 // pred_fallthru
      _
    // Predicated region
    $region6: #{tpu_custom_call.1} parent=1 // pred_check
      _
    $region7: #{tpu_custom_call.1} parent=1 // pred_check_branch
      %27 = sbr.rel (0) target = $region9
    $region8: #{tpu_custom_call.1} parent=1 // pred_region
      _
    $region9: #{tpu_custom_call.1} parent=1 // pred_fallthru
      _
    // Predicated region
    $region10: #{tpu_custom_call.1} parent=1 // pred_check
      _
    $region11: #{tpu_custom_call.1} parent=1 // pred_check_branch
      %29 = sbr.rel (0) target = $region13
    $region12: #{tpu_custom_call.1} parent=1 // pred_region
      %s31 = ssub.s32 16, 16
      %32 = vsyncadd [#allocation3], %s31
      %s34 = sshll.u32 [#allocation2], 4
      %s35 = int_to_ptr.vmem [resolvable:$true] %s34
      %37 = dma.hbm_to_vmem [thread:$0]  %s2, 16, %s35, [#allocation3]
    $region13: #{tpu_custom_call.1} parent=1 // pred_fallthru
      _
    // Predicated region
    $region14: #{tpu_custom_call.1} parent=1 // pred_check
      _
    $region15: #{tpu_custom_call.1} parent=1 // pred_check_branch
      %39 = sbr.rel (0) target = $region17
    $region16: #{tpu_custom_call.1} parent=1 // pred_region
      %s41 = ssub.s32 16, 16
      %42 = vsyncadd [#allocation6], %s41
      %s44 = sshll.u32 [#allocation5], 4
      %s45 = int_to_ptr.vmem [resolvable:$true] %s44
      %47 = dma.hbm_to_vmem [thread:$0]  %s3, 16, %s45, [#allocation6]
    $region17: #{tpu_custom_call.1} parent=1 // pred_fallthru
      _
    // Predicated region
    $region18: #{tpu_custom_call.1} parent=1 // pred_check
      _
    $region19: #{tpu_custom_call.1} parent=1 // pred_check_branch
      %49 = sbr.rel (0) target = $region21
    $region20: #{tpu_custom_call.1} parent=1 // pred_region
      %s51 = ssub.s32 16, 16
      %52 = vsyncadd [#allocation6], %s51
      %s54 = sshll.u32 [#allocation7], 4
      %s55 = int_to_ptr.vmem [resolvable:$true] %s54
      %57 = dma.hbm_to_vmem [thread:$0]  %s4, 16, %s55, [#allocation6]
    $region21: #{tpu_custom_call.1} parent=1 // pred_fallthru
      _
    // Predicated region
    $region22: #{tpu_custom_call.1} parent=1 // pred_check
      _
    $region23: #{tpu_custom_call.1} parent=1 // pred_check_branch
      %59 = sbr.rel (0) target = $region25
    $region24: #{tpu_custom_call.1} parent=1 // pred_region
      %s61 = ssub.s32 128, 128
      %62 = vsyncadd [#allocation9], %s61
      %s64 = sshll.u32 [#allocation8], 4
      %s65 = int_to_ptr.vmem [resolvable:$true] %s64
      %67 = dma.hbm_to_vmem [thread:$0]  %s5, 128, %s65, [#allocation9]
    $region25: #{tpu_custom_call.1} parent=1 // pred_fallthru
      _
    // Predicated region
    $region26: #{tpu_custom_call.1} parent=1 // pred_check
      _
    $region27: #{tpu_custom_call.1} parent=1 // pred_check_branch
      %69 = sbr.rel (0) target = $region29
    $region28: #{tpu_custom_call.1} parent=1 // pred_region
      %s71 = ssub.s32 37632, 37632
      %72 = vsyncadd [#allocation9], %s71
      %s73 = sshll.u32 [#allocation10], 4
      %s74 = int_to_ptr.vmem [resolvable:$true] %s73
      %79 = dma.hbm_to_vmem [thread:$0]  %s6, 37632, %s74, [#allocation9], 768, 768, 48
    $region29: #{tpu_custom_call.1} parent=1 // pred_fallthru
      _
    // Predicated region
    $region30: #{tpu_custom_call.1} parent=1 // pred_check
      _
    $region31: #{tpu_custom_call.1} parent=1 // pred_check_branch
      %81 = sbr.rel (0) target = $region33
    $region32: #{tpu_custom_call.1} parent=1 // pred_region
      _
    $region33: #{tpu_custom_call.1} parent=1 // pred_fallthru
      _
    // Predicated region
    $region34: #{tpu_custom_call.1} parent=1 // pred_check
      _
    $region35: #{tpu_custom_call.1} parent=1 // pred_check_branch
      %83 = sbr.rel (0) target = $region37
    $region36: #{tpu_custom_call.1} parent=1 // pred_region
      %s85 = ssub.s32 16, 16
      %86 = vsyncadd [#allocation12], %s85
      %s88 = sshll.u32 [#allocation11], 4
      %s89 = int_to_ptr.vmem [resolvable:$true] %s88
      %91 = dma.hbm_to_vmem [thread:$0]  %s8, 16, %s89, [#allocation12]
    $region37: #{tpu_custom_call.1} parent=1 // pred_fallthru
      _
    // Predicated region
    $region38: #{tpu_custom_call.1} parent=1 // pred_check
      _
    $region39: #{tpu_custom_call.1} parent=1 // pred_check_branch
      %93 = sbr.rel (0) target = $region41
    $region40: #{tpu_custom_call.1} parent=1 // pred_region
      %94 = dma.done [#allocation3], 16
    $region41: #{tpu_custom_call.1} parent=1 // pred_fallthru
      _
    // Predicated region
    $region42: #{tpu_custom_call.1} parent=1 // pred_check
      _
    $region43: #{tpu_custom_call.1} parent=1 // pred_check_branch
      %96 = sbr.rel (0) target = $region45
    $region44: #{tpu_custom_call.1} parent=1 // pred_region
      %97 = dma.done [#allocation6], 16
    $region45: #{tpu_custom_call.1} parent=1 // pred_fallthru
      _
    // Predicated region
    $region46: #{tpu_custom_call.1} parent=1 // pred_check
      _
    $region47: #{tpu_custom_call.1} parent=1 // pred_check_branch
      %99 = sbr.rel (0) target = $region49
    $region48: #{tpu_custom_call.1} parent=1 // pred_region
      %100 = dma.done [#allocation6], 16
    $region49: #{tpu_custom_call.1} parent=1 // pred_fallthru
      _
    // Predicated region
    $region50: #{tpu_custom_call.1} parent=1 // pred_check
      _
    $region51: #{tpu_custom_call.1} parent=1 // pred_check_branch
      %102 = sbr.rel (0) target = $region53
    $region52: #{tpu_custom_call.1} parent=1 // pred_region
      %103 = dma.done [#allocation9], 128
    $region53: #{tpu_custom_call.1} parent=1 // pred_fallthru
      _
    // Predicated region
    $region54: #{tpu_custom_call.1} parent=1 // pred_check
      _
    $region55: #{tpu_custom_call.1} parent=1 // pred_check_branch
      %105 = sbr.rel (0) target = $region57
    $region56: #{tpu_custom_call.1} parent=1 // pred_region
      %106 = dma.done [#allocation9], 37632
    $region57: #{tpu_custom_call.1} parent=1 // pred_fallthru
      _
    // Predicated region
    $region58: #{tpu_custom_call.1} parent=1 // pred_check
      _
    $region59: #{tpu_custom_call.1} parent=1 // pred_check_branch
      %108 = sbr.rel (0) target = $region61
    $region60: #{tpu_custom_call.1} parent=1 // pred_region
      %109 = dma.done [#allocation12], 16
    $region61: #{tpu_custom_call.1} parent=1 // pred_fallthru
      _
    %v110 = vld [vmem:[#allocation2] sm:$0x1]
    %v112 = vlaneseq
    %v113 = vshrl.u32 %v112, 7
    %v114 = vsub.s32 0, %v113
    %v115 = vrot.slane %v110, %v114
    %vm117 = vcmask 261120
    %118 = vst.msk [vmem:[#allocation13] sm:$0xff] %vm117, %v115
    %119 = vst.msk [vmem:[#allocation13 + $0x8] sm:$0xff] %vm117, %v115
    %v120 = vld [vmem:[%s0] sm:$0xff]
    %v121 = vld [vmem:[%s0 + $0x8] sm:$0xff]
    %v122 = vld [vmem:[#allocation5] sm:$0x1]
    %124 = vset.pattern.permute.xlu0 0
    %125 = vperm.xlu0 %124, %v120
    %v126 = vpop.permute.xlu0 %125
    %129 = vset.pattern.permute.xlu0 0
    %130 = vperm.xlu0 %129, %v121
    %v131 = vpop.permute.xlu0 %130
    %v134 = vlaneseq
    %v135 = vshrl.u32 %v134, 7
    %v136 = vsub.s32 0, %v135
    %v137 = vrot.slane %v122, %v136
    %v139 = vmul.f32 %v126, %v137
    %v140 = vmul.f32 %v131, %v137
    %v141 = vld [vmem:[#allocation7] sm:$0x1]
    %v143 = vlaneseq
    %v144 = vshrl.u32 %v143, 7
    %v145 = vsub.s32 0, %v144
    %v146 = vrot.slane %v141, %v145
    %v148 = vadd.f32 %v139, %v146
    %v149 = vadd.f32 %v140, %v146
    %150 = vst.msk [vmem:[#allocation14] sm:$0xff] %vm117, %v148
    %151 = vst.msk [vmem:[#allocation14 + $0x8] sm:$0xff] %vm117, %v149
    %v152 = vld [vmem:[%s1] sm:$0xff]
    %v153 = vld [vmem:[%s1 + $0x8] sm:$0xff]
    %v154 = vlaneseq
    %v155 = vand.u32 %v154, 127
    %156 = vset.pattern.permute.xlu0 0
    %157 = vperm.xlu0 %156, %v152
    %v158 = vpop.permute.xlu0 %157
    %159 = vset.pattern.permute.xlu0 0
    %160 = vperm.xlu0 %159, %v153
    %v161 = vpop.permute.xlu0 %160
    %vm162 = vcmp.eq.s32.totalorder %v158, %v155
    %vm163 = vcmp.eq.s32.totalorder %v161, %v155
    %v164 = vsel %vm162, 1, 0
    %v165 = vsel %vm163, 1, 0
    %v166 = vcvt.s32.f32 %v164
    %v167 = vcvt.s32.f32 %v165
    %v168 = vld [vmem:[#allocation8] sm:$0x1f]
    %vm169 = vcmask 39936
    %v171 = vsel %vm169, %v166, 0
    %v174 = vsel %vm169, %v167, 0
    %vm176 = vcmask 1044480
    %v178 = vsel %vm176, %v168, 0
    %180 = vmatprep.subr.mxu0 0.0
    %181 = vmatpush1.msra.mxu0 %v178
    %182 = vmatprep.subr.mxu0 0.0
    %183 = vmatpush1.msra.mxu0 0.0
    %184 = vmatprep.subr.mxu0 0.0
    %185 = vmatpush1.msra.mxu0 0.0
    %186 = vmatprep.subr.mxu0 0.0
    %187 = vmatpush1.msra.mxu0 0.0
    %188 = vmatprep.subr.mxu0 0.0
    %189 = vmatpush1.msra.mxu0 0.0
    %190 = vmatprep.subr.mxu0 0.0
    %191 = vmatpush1.msra.mxu0 0.0
    %192 = vmatprep.subr.mxu0 0.0
    %193 = vmatpush1.msra.mxu0 0.0
    %194 = vmatprep.subr.mxu0 0.0
    %195 = vmatpush1.msra.mxu0 0.0
    %196 = vmatprep.subr.mxu0 0.0
    %197 = vmatpush1.msra.mxu0 0.0
    %198 = vmatprep.subr.mxu0 0.0
    %199 = vmatpush1.msra.mxu0 0.0
    %200 = vmatprep.subr.mxu0 0.0
    %201 = vmatpush1.msra.mxu0 0.0
    %202 = vmatprep.subr.mxu0 0.0
    %203 = vmatpush1.msra.mxu0 0.0
    %204 = vmatprep.subr.mxu0 0.0
    %205 = vmatpush1.msra.mxu0 0.0
    %206 = vmatprep.subr.mxu0 0.0
    %207 = vmatpush1.msra.mxu0 0.0
    %208 = vmatprep.subr.mxu0 0.0
    %209 = vmatpush1.msra.mxu0 0.0
    %210 = vmatprep.subr.mxu0 0.0
    %211 = vmatpush1.msra.mxu0 0.0
    %212 = vmatprep.subr.mxu0 0.0
    %213 = vmatpush1.msra.mxu0 0.0
    %214 = vmatprep.subr.mxu0 0.0
    %215 = vmatpush1.msra.mxu0 0.0
    %216 = vmatprep.subr.mxu0 0.0
    %217 = vmatpush1.msra.mxu0 0.0
    %218 = vmatprep.subr.mxu0 0.0
    %219 = vmatpush1.msra.mxu0 0.0
    %220 = vmatprep.subr.mxu0 0.0
    %221 = vmatpush1.msra.mxu0 0.0
    %222 = vmatprep.subr.mxu0 0.0
    %223 = vmatpush1.msra.mxu0 0.0
    %224 = vmatprep.subr.mxu0 0.0
    %225 = vmatpush1.msra.mxu0 0.0
    %226 = vmatprep.subr.mxu0 0.0
    %227 = vmatpush1.msra.mxu0 0.0
    %228 = vmatprep.subr.mxu0 0.0
    %229 = vmatpush1.msra.mxu0 0.0
    %230 = vmatprep.subr.mxu0 0.0
    %231 = vmatpush1.msra.mxu0 0.0
    %232 = vmatprep.subr.mxu0 0.0
    %233 = vmatpush1.msra.mxu0 0.0
    %234 = vmatprep.subr.mxu0 0.0
    %235 = vmatpush1.msra.mxu0 0.0
    %236 = vmatprep.subr.mxu0 0.0
    %237 = vmatpush1.msra.mxu0 0.0
    %238 = vmatprep.subr.mxu0 0.0
    %239 = vmatpush1.msra.mxu0 0.0
    %240 = vmatprep.subr.mxu0 0.0
    %241 = vmatpush1.msra.mxu0 0.0
    %242 = vmatprep.subr.mxu0 0.0
    %243 = vmatpush1.msra.mxu0 0.0
    %244 = vmatprep.mubr.f32.mxu0 0.0
    %245 = vmatmul.mubr.f32.gmra.mrb[0].mxu0 %v171
    %v246 = vpop.f32.mrb[0].mxu0
    %v247 = vadd.f32 0.0, %v246
    %v248 = vpop.f32.mrb[0].mxu0
    %249 = vmatprep.mubr.f32.mxu0 0.0
    %250 = vmatmul.mubr.f32.gmra.mrb[0].mxu0 %v174
    %v251 = vpop.f32.mrb[0].mxu0
    %v252 = vadd.f32 0.0, %v251
    %v253 = vpop.f32.mrb[0].mxu0
    %254 = vdwg.mxu0
    %255 = vst.msk [vmem:[#allocation16] sm:$0xff] %vm117, %v247
    %256 = vst.msk [vmem:[#allocation16 + $0x8] sm:$0xff] %vm117, %v252
    %v257 = vld [vmem:[#allocation10] sm:$0xff]
    %v258 = vld [vmem:[#allocation10 + $0x8] sm:$0xff]
    %v259 = vld [vmem:[#allocation10 + $0x10] sm:$0xff]
    %v260 = vld [vmem:[#allocation10 + $0x18] sm:$0xff]
    %v261 = vld [vmem:[#allocation10 + $0x20] sm:$0xff]
    %v262 = vld [vmem:[#allocation10 + $0x28] sm:$0xff]
    %v263 = vld [vmem:[#allocation10 + $0x30] sm:$0xff]
    %v264 = vld [vmem:[#allocation10 + $0x38] sm:$0xff]
    %v265 = vld [vmem:[#allocation10 + $0x40] sm:$0xff]
    %v266 = vld [vmem:[#allocation10 + $0x48] sm:$0xff]
    %v267 = vld [vmem:[#allocation10 + $0x50] sm:$0xff]
    %v268 = vld [vmem:[#allocation10 + $0x58] sm:$0xff]
    %v269 = vld [vmem:[#allocation10 + $0x60] sm:$0xff]
    %v270 = vld [vmem:[#allocation10 + $0x68] sm:$0xff]
    %v271 = vld [vmem:[#allocation10 + $0x70] sm:$0xff]
    %v272 = vld [vmem:[#allocation10 + $0x78] sm:$0xff]
    %v273 = vld [vmem:[#allocation10 + $0x80] sm:$0xff]
    %v274 = vld [vmem:[#allocation10 + $0x88] sm:$0xff]
    %v275 = vld [vmem:[#allocation10 + $0x90] sm:$0xff]
    %v276 = vld [vmem:[#allocation10 + $0x98] sm:$0xff]
    %v277 = vld [vmem:[#allocation10 + $0xa0] sm:$0xff]
    %v278 = vld [vmem:[#allocation10 + $0xa8] sm:$0xff]
    %v279 = vld [vmem:[#allocation10 + $0xb0] sm:$0xff]
    %v280 = vld [vmem:[#allocation10 + $0xb8] sm:$0xff]
    %v281 = vld [vmem:[#allocation10 + $0xc0] sm:$0xff]
    %v282 = vld [vmem:[#allocation10 + $0xc8] sm:$0xff]
    %v283 = vld [vmem:[#allocation10 + $0xd0] sm:$0xff]
    %v284 = vld [vmem:[#allocation10 + $0xd8] sm:$0xff]
    %v285 = vld [vmem:[#allocation10 + $0xe0] sm:$0xff]
    %v286 = vld [vmem:[#allocation10 + $0xe8] sm:$0xff]
    %v287 = vld [vmem:[#allocation10 + $0xf0] sm:$0xff]
    %v288 = vld [vmem:[#allocation10 + $0xf8] sm:$0xff]
    %v289 = vld [vmem:[#allocation10 + $0x100] sm:$0xff]
    %v290 = vld [vmem:[#allocation10 + $0x108] sm:$0xff]
    %v291 = vld [vmem:[#allocation10 + $0x110] sm:$0xff]
    %v292 = vld [vmem:[#allocation10 + $0x118] sm:$0xff]
    %v293 = vld [vmem:[#allocation10 + $0x120] sm:$0xff]
    %v294 = vld [vmem:[#allocation10 + $0x128] sm:$0xff]
    %v295 = vld [vmem:[#allocation10 + $0x130] sm:$0xff]
    %v296 = vld [vmem:[#allocation10 + $0x138] sm:$0xff]
    %v297 = vld [vmem:[#allocation10 + $0x140] sm:$0xff]
    %v298 = vld [vmem:[#allocation10 + $0x148] sm:$0xff]
    %v299 = vld [vmem:[#allocation10 + $0x150] sm:$0xff]
    %v300 = vld [vmem:[#allocation10 + $0x158] sm:$0xff]
    %v301 = vld [vmem:[#allocation10 + $0x160] sm:$0xff]
    %v302 = vld [vmem:[#allocation10 + $0x168] sm:$0xff]
    %v303 = vld [vmem:[#allocation10 + $0x170] sm:$0xff]
    %v304 = vld [vmem:[#allocation10 + $0x178] sm:$0xff]
    %v305 = vld [vmem:[#allocation10 + $0x180] sm:$0xff]
    %v306 = vld [vmem:[#allocation10 + $0x188] sm:$0xff]
    %v307 = vld [vmem:[#allocation10 + $0x190] sm:$0xff]
    %v308 = vld [vmem:[#allocation10 + $0x198] sm:$0xff]
    %v309 = vld [vmem:[#allocation10 + $0x1a0] sm:$0xff]
    %v310 = vld [vmem:[#allocation10 + $0x1a8] sm:$0xff]
    %v311 = vld [vmem:[#allocation10 + $0x1b0] sm:$0xff]
    %v312 = vld [vmem:[#allocation10 + $0x1b8] sm:$0xff]
    %v313 = vld [vmem:[#allocation10 + $0x1c0] sm:$0xff]
    %v314 = vld [vmem:[#allocation10 + $0x1c8] sm:$0xff]
    %v315 = vld [vmem:[#allocation10 + $0x1d0] sm:$0xff]
    %v316 = vld [vmem:[#allocation10 + $0x1d8] sm:$0xff]
    %v317 = vld [vmem:[#allocation10 + $0x1e0] sm:$0xff]
    %v318 = vld [vmem:[#allocation10 + $0x1e8] sm:$0xff]
    %v319 = vld [vmem:[#allocation10 + $0x1f0] sm:$0xff]
    %v320 = vld [vmem:[#allocation10 + $0x1f8] sm:$0xff]
    %v321 = vld [vmem:[#allocation10 + $0x200] sm:$0xff]
    %v322 = vld [vmem:[#allocation10 + $0x208] sm:$0xff]
    %v323 = vld [vmem:[#allocation10 + $0x210] sm:$0xff]
    %v324 = vld [vmem:[#allocation10 + $0x218] sm:$0xff]
    %v325 = vld [vmem:[#allocation10 + $0x220] sm:$0xff]
    %v326 = vld [vmem:[#allocation10 + $0x228] sm:$0xff]
    %v327 = vld [vmem:[#allocation10 + $0x230] sm:$0xff]
    %v328 = vld [vmem:[#allocation10 + $0x238] sm:$0xff]
    %v329 = vld [vmem:[#allocation10 + $0x240] sm:$0xff]
    %v330 = vld [vmem:[#allocation10 + $0x248] sm:$0xff]
    %v331 = vld [vmem:[#allocation10 + $0x250] sm:$0xff]
    %v332 = vld [vmem:[#allocation10 + $0x258] sm:$0xff]
    %v333 = vld [vmem:[#allocation10 + $0x260] sm:$0xff]
    %v334 = vld [vmem:[#allocation10 + $0x268] sm:$0xff]
    %v335 = vld [vmem:[#allocation10 + $0x270] sm:$0xff]
    %v336 = vld [vmem:[#allocation10 + $0x278] sm:$0xff]
    %v337 = vld [vmem:[#allocation10 + $0x280] sm:$0xff]
    %v338 = vld [vmem:[#allocation10 + $0x288] sm:$0xff]
    %v339 = vld [vmem:[#allocation10 + $0x290] sm:$0xff]
    %v340 = vld [vmem:[#allocation10 + $0x298] sm:$0xff]
    %v341 = vld [vmem:[#allocation10 + $0x2a0] sm:$0xff]
    %v342 = vld [vmem:[#allocation10 + $0x2a8] sm:$0xff]
    %v343 = vld [vmem:[#allocation10 + $0x2b0] sm:$0xff]
    %v344 = vld [vmem:[#allocation10 + $0x2b8] sm:$0xff]
    %v345 = vld [vmem:[#allocation10 + $0x2c0] sm:$0xff]
    %v346 = vld [vmem:[#allocation10 + $0x2c8] sm:$0xff]
    %v347 = vld [vmem:[#allocation10 + $0x2d0] sm:$0xff]
    %v348 = vld [vmem:[#allocation10 + $0x2d8] sm:$0xff]
    %v349 = vld [vmem:[#allocation10 + $0x2e0] sm:$0xff]
    %v350 = vld [vmem:[#allocation10 + $0x2e8] sm:$0xff]
    %v351 = vld [vmem:[#allocation10 + $0x2f0] sm:$0xff]
    %v352 = vld [vmem:[#allocation10 + $0x2f8] sm:$0xff]
    %v353 = vld [vmem:[#allocation10 + $0x300] sm:$0xff]
    %v354 = vld [vmem:[#allocation10 + $0x308] sm:$0xff]
    %v355 = vld [vmem:[#allocation10 + $0x310] sm:$0xff]
    %v356 = vld [vmem:[#allocation10 + $0x318] sm:$0xff]
    %v357 = vld [vmem:[#allocation10 + $0x320] sm:$0xff]
    %v358 = vld [vmem:[#allocation10 + $0x328] sm:$0xff]
    %v359 = vld [vmem:[#allocation10 + $0x330] sm:$0xff]
    %v360 = vld [vmem:[#allocation10 + $0x338] sm:$0xff]
    %v361 = vld [vmem:[#allocation10 + $0x340] sm:$0xff]
    %v362 = vld [vmem:[#allocation10 + $0x348] sm:$0xff]
    %v363 = vld [vmem:[#allocation10 + $0x350] sm:$0xff]
    %v364 = vld [vmem:[#allocation10 + $0x358] sm:$0xff]
    %v365 = vld [vmem:[#allocation10 + $0x360] sm:$0xff]
    %v366 = vld [vmem:[#allocation10 + $0x368] sm:$0xff]
    %v367 = vld [vmem:[#allocation10 + $0x370] sm:$0xff]
    %v368 = vld [vmem:[#allocation10 + $0x378] sm:$0xff]
    %v369 = vld [vmem:[#allocation10 + $0x380] sm:$0xff]
    %v370 = vld [vmem:[#allocation10 + $0x388] sm:$0xff]
    %v371 = vld [vmem:[#allocation10 + $0x390] sm:$0xff]
    %v372 = vld [vmem:[#allocation10 + $0x398] sm:$0xff]
    %v373 = vld [vmem:[#allocation10 + $0x3a0] sm:$0xff]
    %v374 = vld [vmem:[#allocation10 + $0x3a8] sm:$0xff]
    %v375 = vld [vmem:[#allocation10 + $0x3b0] sm:$0xff]
    %v376 = vld [vmem:[#allocation10 + $0x3b8] sm:$0xff]
    %v377 = vld [vmem:[#allocation10 + $0x3c0] sm:$0xff]
    %v378 = vld [vmem:[#allocation10 + $0x3c8] sm:$0xff]
    %v379 = vld [vmem:[#allocation10 + $0x3d0] sm:$0xff]
    %v380 = vld [vmem:[#allocation10 + $0x3d8] sm:$0xff]
    %v381 = vld [vmem:[#allocation10 + $0x3e0] sm:$0xff]
    %v382 = vld [vmem:[#allocation10 + $0x3e8] sm:$0xff]
    %v383 = vld [vmem:[#allocation10 + $0x3f0] sm:$0xff]
    %v384 = vld [vmem:[#allocation10 + $0x3f8] sm:$0xff]
    %v385 = vld [vmem:[#allocation10 + $0x400] sm:$0xff]
    %v386 = vld [vmem:[#allocation10 + $0x408] sm:$0xff]
    %v387 = vld [vmem:[#allocation10 + $0x410] sm:$0xff]
    %v388 = vld [vmem:[#allocation10 + $0x418] sm:$0xff]
    %v389 = vld [vmem:[#allocation10 + $0x420] sm:$0xff]
    %v390 = vld [vmem:[#allocation10 + $0x428] sm:$0xff]
    %v391 = vld [vmem:[#allocation10 + $0x430] sm:$0xff]
    %v392 = vld [vmem:[#allocation10 + $0x438] sm:$0xff]
    %v393 = vld [vmem:[#allocation10 + $0x440] sm:$0xff]
    %v394 = vld [vmem:[#allocation10 + $0x448] sm:$0xff]
    %v395 = vld [vmem:[#allocation10 + $0x450] sm:$0xff]
    %v396 = vld [vmem:[#allocation10 + $0x458] sm:$0xff]
    %v397 = vld [vmem:[#allocation10 + $0x460] sm:$0xff]
    %v398 = vld [vmem:[#allocation10 + $0x468] sm:$0xff]
    %v399 = vld [vmem:[#allocation10 + $0x470] sm:$0xff]
    %v400 = vld [vmem:[#allocation10 + $0x478] sm:$0xff]
    %v401 = vld [vmem:[#allocation10 + $0x480] sm:$0xff]
    %v402 = vld [vmem:[#allocation10 + $0x488] sm:$0xff]
    %v403 = vld [vmem:[#allocation10 + $0x490] sm:$0xff]
    %v404 = vld [vmem:[#allocation10 + $0x498] sm:$0xff]
    %v405 = vld [vmem:[#allocation10 + $0x4a0] sm:$0xff]
    %v406 = vld [vmem:[#allocation10 + $0x4a8] sm:$0xff]
    %v407 = vld [vmem:[#allocation10 + $0x4b0] sm:$0xff]
    %v408 = vld [vmem:[#allocation10 + $0x4b8] sm:$0xff]
    %v409 = vld [vmem:[#allocation10 + $0x4c0] sm:$0xff]
    %v410 = vld [vmem:[#allocation10 + $0x4c8] sm:$0xff]
    %v411 = vld [vmem:[#allocation10 + $0x4d0] sm:$0xff]
    %v412 = vld [vmem:[#allocation10 + $0x4d8] sm:$0xff]
    %v413 = vld [vmem:[#allocation10 + $0x4e0] sm:$0xff]
    %v414 = vld [vmem:[#allocation10 + $0x4e8] sm:$0xff]
    %v415 = vld [vmem:[#allocation10 + $0x4f0] sm:$0xff]
    %v416 = vld [vmem:[#allocation10 + $0x4f8] sm:$0xff]
    %v417 = vld [vmem:[#allocation10 + $0x500] sm:$0xff]
    %v418 = vld [vmem:[#allocation10 + $0x508] sm:$0xff]
    %v419 = vld [vmem:[#allocation10 + $0x510] sm:$0xff]
    %v420 = vld [vmem:[#allocation10 + $0x518] sm:$0xff]
    %v421 = vld [vmem:[#allocation10 + $0x520] sm:$0xff]
    %v422 = vld [vmem:[#allocation10 + $0x528] sm:$0xff]
    %v423 = vld [vmem:[#allocation10 + $0x530] sm:$0xff]
    %v424 = vld [vmem:[#allocation10 + $0x538] sm:$0xff]
    %v425 = vld [vmem:[#allocation10 + $0x540] sm:$0xff]
    %v426 = vld [vmem:[#allocation10 + $0x548] sm:$0xff]
    %v427 = vld [vmem:[#allocation10 + $0x550] sm:$0xff]
    %v428 = vld [vmem:[#allocation10 + $0x558] sm:$0xff]
    %v429 = vld [vmem:[#allocation10 + $0x560] sm:$0xff]
    %v430 = vld [vmem:[#allocation10 + $0x568] sm:$0xff]
    %v431 = vld [vmem:[#allocation10 + $0x570] sm:$0xff]
    %v432 = vld [vmem:[#allocation10 + $0x578] sm:$0xff]
    %v433 = vld [vmem:[#allocation10 + $0x580] sm:$0xff]
    %v434 = vld [vmem:[#allocation10 + $0x588] sm:$0xff]
    %v435 = vld [vmem:[#allocation10 + $0x590] sm:$0xff]
    %v436 = vld [vmem:[#allocation10 + $0x598] sm:$0xff]
    %v437 = vld [vmem:[#allocation10 + $0x5a0] sm:$0xff]
    %v438 = vld [vmem:[#allocation10 + $0x5a8] sm:$0xff]
    %v439 = vld [vmem:[#allocation10 + $0x5b0] sm:$0xff]
    %v440 = vld [vmem:[#allocation10 + $0x5b8] sm:$0xff]
    %v441 = vld [vmem:[#allocation10 + $0x5c0] sm:$0xff]
    %v442 = vld [vmem:[#allocation10 + $0x5c8] sm:$0xff]
    %v443 = vld [vmem:[#allocation10 + $0x5d0] sm:$0xff]
    %v444 = vld [vmem:[#allocation10 + $0x5d8] sm:$0xff]
    %v445 = vld [vmem:[#allocation10 + $0x5e0] sm:$0xff]
    %v446 = vld [vmem:[#allocation10 + $0x5e8] sm:$0xff]
    %v447 = vld [vmem:[#allocation10 + $0x5f0] sm:$0xff]
    %v448 = vld [vmem:[#allocation10 + $0x5f8] sm:$0xff]
    %v449 = vld [vmem:[#allocation10 + $0x600] sm:$0xff]
    %v450 = vld [vmem:[#allocation10 + $0x608] sm:$0xff]
    %v451 = vld [vmem:[#allocation10 + $0x610] sm:$0xff]
    %v452 = vld [vmem:[#allocation10 + $0x618] sm:$0xff]
    %v453 = vld [vmem:[#allocation10 + $0x620] sm:$0xff]
    %v454 = vld [vmem:[#allocation10 + $0x628] sm:$0xff]
    %v455 = vld [vmem:[#allocation10 + $0x630] sm:$0xff]
    %v456 = vld [vmem:[#allocation10 + $0x638] sm:$0xff]
    %v457 = vld [vmem:[#allocation10 + $0x640] sm:$0xff]
    %v458 = vld [vmem:[#allocation10 + $0x648] sm:$0xff]
    %v459 = vld [vmem:[#allocation10 + $0x650] sm:$0xff]
    %v460 = vld [vmem:[#allocation10 + $0x658] sm:$0xff]
    %v461 = vld [vmem:[#allocation10 + $0x660] sm:$0xff]
    %v462 = vld [vmem:[#allocation10 + $0x668] sm:$0xff]
    %v463 = vld [vmem:[#allocation10 + $0x670] sm:$0xff]
    %v464 = vld [vmem:[#allocation10 + $0x678] sm:$0xff]
    %v465 = vld [vmem:[#allocation10 + $0x680] sm:$0xff]
    %v466 = vld [vmem:[#allocation10 + $0x688] sm:$0xff]
    %v467 = vld [vmem:[#allocation10 + $0x690] sm:$0xff]
    %v468 = vld [vmem:[#allocation10 + $0x698] sm:$0xff]
    %v469 = vld [vmem:[#allocation10 + $0x6a0] sm:$0xff]
    %v470 = vld [vmem:[#allocation10 + $0x6a8] sm:$0xff]
    %v471 = vld [vmem:[#allocation10 + $0x6b0] sm:$0xff]
    %v472 = vld [vmem:[#allocation10 + $0x6b8] sm:$0xff]
    %v473 = vld [vmem:[#allocation10 + $0x6c0] sm:$0xff]
    %v474 = vld [vmem:[#allocation10 + $0x6c8] sm:$0xff]
    %v475 = vld [vmem:[#allocation10 + $0x6d0] sm:$0xff]
    %v476 = vld [vmem:[#allocation10 + $0x6d8] sm:$0xff]
    %v477 = vld [vmem:[#allocation10 + $0x6e0] sm:$0xff]
    %v478 = vld [vmem:[#allocation10 + $0x6e8] sm:$0xff]
    %v479 = vld [vmem:[#allocation10 + $0x6f0] sm:$0xff]
    %v480 = vld [vmem:[#allocation10 + $0x6f8] sm:$0xff]
    %v481 = vld [vmem:[#allocation10 + $0x700] sm:$0xff]
    %v482 = vld [vmem:[#allocation10 + $0x708] sm:$0xff]
    %v483 = vld [vmem:[#allocation10 + $0x710] sm:$0xff]
    %v484 = vld [vmem:[#allocation10 + $0x718] sm:$0xff]
    %v485 = vld [vmem:[#allocation10 + $0x720] sm:$0xff]
    %v486 = vld [vmem:[#allocation10 + $0x728] sm:$0xff]
    %v487 = vld [vmem:[#allocation10 + $0x730] sm:$0xff]
    %v488 = vld [vmem:[#allocation10 + $0x738] sm:$0xff]
    %v489 = vld [vmem:[#allocation10 + $0x740] sm:$0xff]
    %v490 = vld [vmem:[#allocation10 + $0x748] sm:$0xff]
    %v491 = vld [vmem:[#allocation10 + $0x750] sm:$0xff]
    %v492 = vld [vmem:[#allocation10 + $0x758] sm:$0xff]
    %v493 = vld [vmem:[#allocation10 + $0x760] sm:$0xff]
    %v494 = vld [vmem:[#allocation10 + $0x768] sm:$0xff]
    %v495 = vld [vmem:[#allocation10 + $0x770] sm:$0xff]
    %v496 = vld [vmem:[#allocation10 + $0x778] sm:$0xff]
    %v497 = vld [vmem:[#allocation10 + $0x780] sm:$0xff]
    %v498 = vld [vmem:[#allocation10 + $0x788] sm:$0xff]
    %v499 = vld [vmem:[#allocation10 + $0x790] sm:$0xff]
    %v500 = vld [vmem:[#allocation10 + $0x798] sm:$0xff]
    %v501 = vld [vmem:[#allocation10 + $0x7a0] sm:$0xff]
    %v502 = vld [vmem:[#allocation10 + $0x7a8] sm:$0xff]
    %v503 = vld [vmem:[#allocation10 + $0x7b0] sm:$0xff]
    %v504 = vld [vmem:[#allocation10 + $0x7b8] sm:$0xff]
    %v505 = vld [vmem:[#allocation10 + $0x7c0] sm:$0xff]
    %v506 = vld [vmem:[#allocation10 + $0x7c8] sm:$0xff]
    %v507 = vld [vmem:[#allocation10 + $0x7d0] sm:$0xff]
    %v508 = vld [vmem:[#allocation10 + $0x7d8] sm:$0xff]
    %v509 = vld [vmem:[#allocation10 + $0x7e0] sm:$0xff]
    %v510 = vld [vmem:[#allocation10 + $0x7e8] sm:$0xff]
    %v511 = vld [vmem:[#allocation10 + $0x7f0] sm:$0xff]
    %v512 = vld [vmem:[#allocation10 + $0x7f8] sm:$0xff]
    %v513 = vld [vmem:[#allocation10 + $0x800] sm:$0xff]
    %v514 = vld [vmem:[#allocation10 + $0x808] sm:$0xff]
    %v515 = vld [vmem:[#allocation10 + $0x810] sm:$0xff]
    %v516 = vld [vmem:[#allocation10 + $0x818] sm:$0xff]
    %v517 = vld [vmem:[#allocation10 + $0x820] sm:$0xff]
    %v518 = vld [vmem:[#allocation10 + $0x828] sm:$0xff]
    %v519 = vld [vmem:[#allocation10 + $0x830] sm:$0xff]
    %v520 = vld [vmem:[#allocation10 + $0x838] sm:$0xff]
    %v521 = vld [vmem:[#allocation10 + $0x840] sm:$0xff]
    %v522 = vld [vmem:[#allocation10 + $0x848] sm:$0xff]
    %v523 = vld [vmem:[#allocation10 + $0x850] sm:$0xff]
    %v524 = vld [vmem:[#allocation10 + $0x858] sm:$0xff]
    %v525 = vld [vmem:[#allocation10 + $0x860] sm:$0xff]
    %v526 = vld [vmem:[#allocation10 + $0x868] sm:$0xff]
    %v527 = vld [vmem:[#allocation10 + $0x870] sm:$0xff]
    %v528 = vld [vmem:[#allocation10 + $0x878] sm:$0xff]
    %v529 = vld [vmem:[#allocation10 + $0x880] sm:$0xff]
    %v530 = vld [vmem:[#allocation10 + $0x888] sm:$0xff]
    %v531 = vld [vmem:[#allocation10 + $0x890] sm:$0xff]
    %v532 = vld [vmem:[#allocation10 + $0x898] sm:$0xff]
    %v533 = vld [vmem:[#allocation10 + $0x8a0] sm:$0xff]
    %v534 = vld [vmem:[#allocation10 + $0x8a8] sm:$0xff]
    %v535 = vld [vmem:[#allocation10 + $0x8b0] sm:$0xff]
    %v536 = vld [vmem:[#allocation10 + $0x8b8] sm:$0xff]
    %v537 = vld [vmem:[#allocation10 + $0x8c0] sm:$0xff]
    %v538 = vld [vmem:[#allocation10 + $0x8c8] sm:$0xff]
    %v539 = vld [vmem:[#allocation10 + $0x8d0] sm:$0xff]
    %v540 = vld [vmem:[#allocation10 + $0x8d8] sm:$0xff]
    %v541 = vld [vmem:[#allocation10 + $0x8e0] sm:$0xff]
    %v542 = vld [vmem:[#allocation10 + $0x8e8] sm:$0xff]
    %v543 = vld [vmem:[#allocation10 + $0x8f0] sm:$0xff]
    %v544 = vld [vmem:[#allocation10 + $0x8f8] sm:$0xff]
    %v545 = vld [vmem:[#allocation10 + $0x900] sm:$0xff]
    %v546 = vld [vmem:[#allocation10 + $0x908] sm:$0xff]
    %v547 = vld [vmem:[#allocation10 + $0x910] sm:$0xff]
    %v548 = vld [vmem:[#allocation10 + $0x918] sm:$0xff]
    %v549 = vld [vmem:[#allocation10 + $0x920] sm:$0xff]
    %v550 = vld [vmem:[#allocation10 + $0x928] sm:$0xff]
    %v551 = vld [vmem:[%s7] sm:$0xff]
    %v552 = vld [vmem:[%s7 + $0x8] sm:$0xff]
    %v553 = vld [vmem:[%s7 + $0x10] sm:$0xff]
    %v554 = vld [vmem:[%s7 + $0x18] sm:$0xff]
    %v555 = vld [vmem:[%s7 + $0x20] sm:$0xff]
    %v556 = vld [vmem:[%s7 + $0x28] sm:$0xff]
    %v557 = vld [vmem:[%s7 + $0x30] sm:$0xff]
    %v558 = vld [vmem:[%s7 + $0x38] sm:$0xff]
    %v559 = vld [vmem:[%s7 + $0x40] sm:$0xff]
    %v560 = vld [vmem:[%s7 + $0x48] sm:$0xff]
    %v561 = vld [vmem:[%s7 + $0x50] sm:$0xff]
    %v562 = vld [vmem:[%s7 + $0x58] sm:$0xff]
    %v563 = vld [vmem:[%s7 + $0x60] sm:$0xff]
    %v564 = vld [vmem:[%s7 + $0x68] sm:$0xff]
    %v565 = vld [vmem:[%s7 + $0x70] sm:$0xff]
    %v566 = vld [vmem:[%s7 + $0x78] sm:$0xff]
    %v567 = vld [vmem:[%s7 + $0x80] sm:$0xff]
    %v568 = vld [vmem:[%s7 + $0x88] sm:$0xff]
    %v569 = vld [vmem:[%s7 + $0x90] sm:$0xff]
    %v570 = vld [vmem:[%s7 + $0x98] sm:$0xff]
    %v571 = vld [vmem:[%s7 + $0xa0] sm:$0xff]
    %v572 = vld [vmem:[%s7 + $0xa8] sm:$0xff]
    %v573 = vld [vmem:[%s7 + $0xb0] sm:$0xff]
    %v574 = vld [vmem:[%s7 + $0xb8] sm:$0xff]
    %v575 = vld [vmem:[%s7 + $0xc0] sm:$0xff]
    %v576 = vld [vmem:[%s7 + $0xc8] sm:$0xff]
    %v577 = vld [vmem:[%s7 + $0xd0] sm:$0xff]
    %v578 = vld [vmem:[%s7 + $0xd8] sm:$0xff]
    %v579 = vld [vmem:[%s7 + $0xe0] sm:$0xff]
    %v580 = vld [vmem:[%s7 + $0xe8] sm:$0xff]
    %v581 = vld [vmem:[%s7 + $0xf0] sm:$0xff]
    %v582 = vld [vmem:[%s7 + $0xf8] sm:$0xff]
    %v583 = vld [vmem:[%s7 + $0x100] sm:$0xff]
    %v584 = vld [vmem:[%s7 + $0x108] sm:$0xff]
    %v585 = vld [vmem:[%s7 + $0x110] sm:$0xff]
    %v586 = vld [vmem:[%s7 + $0x118] sm:$0xff]
    %v587 = vld [vmem:[%s7 + $0x120] sm:$0xff]
    %v588 = vld [vmem:[%s7 + $0x128] sm:$0xff]
    %v589 = vld [vmem:[%s7 + $0x130] sm:$0xff]
    %v590 = vld [vmem:[%s7 + $0x138] sm:$0xff]
    %v591 = vld [vmem:[%s7 + $0x140] sm:$0xff]
    %v592 = vld [vmem:[%s7 + $0x148] sm:$0xff]
    %v593 = vld [vmem:[%s7 + $0x150] sm:$0xff]
    %v594 = vld [vmem:[%s7 + $0x158] sm:$0xff]
    %v595 = vld [vmem:[%s7 + $0x160] sm:$0xff]
    %v596 = vld [vmem:[%s7 + $0x168] sm:$0xff]
    %v597 = vld [vmem:[%s7 + $0x170] sm:$0xff]
    %v598 = vld [vmem:[%s7 + $0x178] sm:$0xff]
    %v599 = vld [vmem:[%s7 + $0x180] sm:$0xff]
    %v600 = vld [vmem:[%s7 + $0x188] sm:$0xff]
    %v601 = vld [vmem:[%s7 + $0x190] sm:$0xff]
    %v602 = vld [vmem:[%s7 + $0x198] sm:$0xff]
    %v603 = vld [vmem:[%s7 + $0x1a0] sm:$0xff]
    %v604 = vld [vmem:[%s7 + $0x1a8] sm:$0xff]
    %v605 = vld [vmem:[%s7 + $0x1b0] sm:$0xff]
    %v606 = vld [vmem:[%s7 + $0x1b8] sm:$0xff]
    %v607 = vld [vmem:[%s7 + $0x1c0] sm:$0xff]
    %v608 = vld [vmem:[%s7 + $0x1c8] sm:$0xff]
    %v609 = vld [vmem:[%s7 + $0x1d0] sm:$0xff]
    %v610 = vld [vmem:[%s7 + $0x1d8] sm:$0xff]
    %v611 = vld [vmem:[%s7 + $0x1e0] sm:$0xff]
    %v612 = vld [vmem:[%s7 + $0x1e8] sm:$0xff]
    %v613 = vld [vmem:[%s7 + $0x1f0] sm:$0xff]
    %v614 = vld [vmem:[%s7 + $0x1f8] sm:$0xff]
    %v615 = vld [vmem:[%s7 + $0x200] sm:$0xff]
    %v616 = vld [vmem:[%s7 + $0x208] sm:$0xff]
    %v617 = vld [vmem:[%s7 + $0x210] sm:$0xff]
    %v618 = vld [vmem:[%s7 + $0x218] sm:$0xff]
    %v619 = vld [vmem:[%s7 + $0x220] sm:$0xff]
    %v620 = vld [vmem:[%s7 + $0x228] sm:$0xff]
    %v621 = vld [vmem:[%s7 + $0x230] sm:$0xff]
    %v622 = vld [vmem:[%s7 + $0x238] sm:$0xff]
    %v623 = vld [vmem:[%s7 + $0x240] sm:$0xff]
    %v624 = vld [vmem:[%s7 + $0x248] sm:$0xff]
    %v625 = vld [vmem:[%s7 + $0x250] sm:$0xff]
    %v626 = vld [vmem:[%s7 + $0x258] sm:$0xff]
    %v627 = vld [vmem:[%s7 + $0x260] sm:$0xff]
    %v628 = vld [vmem:[%s7 + $0x268] sm:$0xff]
    %v629 = vld [vmem:[%s7 + $0x270] sm:$0xff]
    %v630 = vld [vmem:[%s7 + $0x278] sm:$0xff]
    %v631 = vld [vmem:[%s7 + $0x280] sm:$0xff]
    %v632 = vld [vmem:[%s7 + $0x288] sm:$0xff]
    %v633 = vld [vmem:[%s7 + $0x290] sm:$0xff]
    %v634 = vld [vmem:[%s7 + $0x298] sm:$0xff]
    %v635 = vld [vmem:[%s7 + $0x2a0] sm:$0xff]
    %v636 = vld [vmem:[%s7 + $0x2a8] sm:$0xff]
    %v637 = vld [vmem:[%s7 + $0x2b0] sm:$0xff]
    %v638 = vld [vmem:[%s7 + $0x2b8] sm:$0xff]
    %v639 = vld [vmem:[%s7 + $0x2c0] sm:$0xff]
    %v640 = vld [vmem:[%s7 + $0x2c8] sm:$0xff]
    %v641 = vld [vmem:[%s7 + $0x2d0] sm:$0xff]
    %v642 = vld [vmem:[%s7 + $0x2d8] sm:$0xff]
    %v643 = vld [vmem:[%s7 + $0x2e0] sm:$0xff]
    %v644 = vld [vmem:[%s7 + $0x2e8] sm:$0xff]
    %v645 = vld [vmem:[%s7 + $0x2f0] sm:$0xff]
    %v646 = vld [vmem:[%s7 + $0x2f8] sm:$0xff]
    %v647 = vld [vmem:[#allocation11] sm:$0x1]
    %v649 = vlaneseq
    %v650 = vshrl.u32 %v649, 7
    %v651 = vsub.s32 0, %v650
    %v652 = vrot.slane %v647, %v651
    %654 = vmatprep.subr.mxu0 0.0
    %655 = vmatpush1.msra.mxu0 %v551
    %656 = vmatprep.subr.mxu0 0.0
    %657 = vmatpush1.msra.mxu0 %v552
    %658 = vmatprep.subr.mxu0 0.0
    %659 = vmatpush1.msra.mxu0 %v553
    %660 = vmatprep.subr.mxu0 0.0
    %661 = vmatpush1.msra.mxu0 %v554
    %662 = vmatprep.subr.mxu0 0.0
    %663 = vmatpush1.msra.mxu0 %v555
    %664 = vmatprep.subr.mxu0 0.0
    %665 = vmatpush1.msra.mxu0 %v556
    %666 = vmatprep.subr.mxu0 0.0
    %667 = vmatpush1.msra.mxu0 %v557
    %668 = vmatprep.subr.mxu0 0.0
    %669 = vmatpush1.msra.mxu0 %v558
    %670 = vmatprep.subr.mxu0 0.0
    %671 = vmatpush1.msra.mxu0 %v559
    %672 = vmatprep.subr.mxu0 0.0
    %673 = vmatpush1.msra.mxu0 %v560
    %674 = vmatprep.subr.mxu0 0.0
    %675 = vmatpush1.msra.mxu0 %v561
    %676 = vmatprep.subr.mxu0 0.0
    %677 = vmatpush1.msra.mxu0 %v562
    %678 = vmatprep.subr.mxu0 0.0
    %679 = vmatpush1.msra.mxu0 %v563
    %680 = vmatprep.subr.mxu0 0.0
    %681 = vmatpush1.msra.mxu0 %v564
    %682 = vmatprep.subr.mxu0 0.0
    %683 = vmatpush1.msra.mxu0 %v565
    %684 = vmatprep.subr.mxu0 0.0
    %685 = vmatpush1.msra.mxu0 %v566
    %686 = vmatprep.subr.mxu0 0.0
    %687 = vmatpush1.msra.mxu0 %v567
    %688 = vmatprep.subr.mxu0 0.0
    %689 = vmatpush1.msra.mxu0 %v568
    %690 = vmatprep.subr.mxu0 0.0
    %691 = vmatpush1.msra.mxu0 %v569
    %692 = vmatprep.subr.mxu0 0.0
    %693 = vmatpush1.msra.mxu0 %v570
    %694 = vmatprep.subr.mxu0 0.0
    %695 = vmatpush1.msra.mxu0 %v571
    %696 = vmatprep.subr.mxu0 0.0
    %697 = vmatpush1.msra.mxu0 %v572
    %698 = vmatprep.subr.mxu0 0.0
    %699 = vmatpush1.msra.mxu0 %v573
    %700 = vmatprep.subr.mxu0 0.0
    %701 = vmatpush1.msra.mxu0 %v574
    %702 = vmatprep.subr.mxu0 0.0
    %703 = vmatpush1.msra.mxu0 %v575
    %704 = vmatprep.subr.mxu0 0.0
    %705 = vmatpush1.msra.mxu0 %v576
    %706 = vmatprep.subr.mxu0 0.0
    %707 = vmatpush1.msra.mxu0 %v577
    %708 = vmatprep.subr.mxu0 0.0
    %709 = vmatpush1.msra.mxu0 %v578
    %710 = vmatprep.subr.mxu0 0.0
    %711 = vmatpush1.msra.mxu0 %v579
    %712 = vmatprep.subr.mxu0 0.0
    %713 = vmatpush1.msra.mxu0 %v580
    %714 = vmatprep.subr.mxu0 0.0
    %715 = vmatpush1.msra.mxu0 %v581
    %716 = vmatprep.subr.mxu0 0.0
    %717 = vmatpush1.msra.mxu0 %v582
    %718 = vmatprep.mubr.f32.mxu0 %v258
    %719 = vmatmul.mubr.f32.gmra.mrb[0].mxu0 %v257
    %v720 = vpop.f32.mrb[0].mxu0
    %v721 = vadd.f32 %v652, %v720
    %v722 = vpop.f32.mrb[0].mxu0
    %723 = vmatprep.mubr.f32.mxu0 %v264
    %724 = vmatmul.mubr.f32.gmra.mrb[0].mxu0 %v263
    %v725 = vpop.f32.mrb[0].mxu0
    %v726 = vadd.f32 %v652, %v725
    %v727 = vpop.f32.mrb[0].mxu0
    %728 = vmatprep.mubr.f32.mxu0 %v270
    %729 = vmatmul.mubr.f32.gmra.mrb[0].mxu0 %v269
    %v730 = vpop.f32.mrb[0].mxu0
    %v731 = vadd.f32 %v652, %v730
    %v732 = vpop.f32.mrb[0].mxu0
    %733 = vmatprep.mubr.f32.mxu0 %v276
    %734 = vmatmul.mubr.f32.gmra.mrb[0].mxu0 %v275
    %v735 = vpop.f32.mrb[0].mxu0
    %v736 = vadd.f32 %v652, %v735
    %v737 = vpop.f32.mrb[0].mxu0
    %738 = vmatprep.mubr.f32.mxu0 %v282
    %739 = vmatmul.mubr.f32.gmra.mrb[0].mxu0 %v281
    %v740 = vpop.f32.mrb[0].mxu0
    %v741 = vadd.f32 %v652, %v740
    %v742 = vpop.f32.mrb[0].mxu0
    %743 = vmatprep.mubr.f32.mxu0 %v288
    %744 = vmatmul.mubr.f32.gmra.mrb[0].mxu0 %v287
    %v745 = vpop.f32.mrb[0].mxu0
    %v746 = vadd.f32 %v652, %v745
    %v747 = vpop.f32.mrb[0].mxu0
    %748 = vmatprep.mubr.f32.mxu0 %v294
    %749 = vmatmul.mubr.f32.gmra.mrb[0].mxu0 %v293
    %v750 = vpop.f32.mrb[0].mxu0
    %v751 = vadd.f32 %v652, %v750
    %v752 = vpop.f32.mrb[0].mxu0
    %753 = vmatprep.mubr.f32.mxu0 %v300
    %754 = vmatmul.mubr.f32.gmra.mrb[0].mxu0 %v299
    %v755 = vpop.f32.mrb[0].mxu0
    %v756 = vadd.f32 %v652, %v755
    %v757 = vpop.f32.mrb[0].mxu0
    %758 = vmatprep.mubr.f32.mxu0 %v306
    %759 = vmatmul.mubr.f32.gmra.mrb[0].mxu0 %v305
    %v760 = vpop.f32.mrb[0].mxu0
    %v761 = vadd.f32 %v652, %v760
    %v762 = vpop.f32.mrb[0].mxu0
    %763 = vmatprep.mubr.f32.mxu0 %v312
    %764 = vmatmul.mubr.f32.gmra.mrb[0].mxu0 %v311
    %v765 = vpop.f32.mrb[0].mxu0
    %v766 = vadd.f32 %v652, %v765
    %v767 = vpop.f32.mrb[0].mxu0
    %768 = vmatprep.mubr.f32.mxu0 %v318
    %769 = vmatmul.mubr.f32.gmra.mrb[0].mxu0 %v317
    %v770 = vpop.f32.mrb[0].mxu0
    %v771 = vadd.f32 %v652, %v770
    %v772 = vpop.f32.mrb[0].mxu0
    %773 = vmatprep.mubr.f32.mxu0 %v324
    %774 = vmatmul.mubr.f32.gmra.mrb[0].mxu0 %v323
    %v775 = vpop.f32.mrb[0].mxu0
    %v776 = vadd.f32 %v652, %v775
    %v777 = vpop.f32.mrb[0].mxu0
    %778 = vmatprep.mubr.f32.mxu0 %v330
    %779 = vmatmul.mubr.f32.gmra.mrb[0].mxu0 %v329
    %v780 = vpop.f32.mrb[0].mxu0
    %v781 = vadd.f32 %v652, %v780
    %v782 = vpop.f32.mrb[0].mxu0
    %783 = vmatprep.mubr.f32.mxu0 %v336
    %784 = vmatmul.mubr.f32.gmra.mrb[0].mxu0 %v335
    %v785 = vpop.f32.mrb[0].mxu0
    %v786 = vadd.f32 %v652, %v785
    %v787 = vpop.f32.mrb[0].mxu0
    %788 = vmatprep.mubr.f32.mxu0 %v342
    %789 = vmatmul.mubr.f32.gmra.mrb[0].mxu0 %v341
    %v790 = vpop.f32.mrb[0].mxu0
    %v791 = vadd.f32 %v652, %v790
    %v792 = vpop.f32.mrb[0].mxu0
    %793 = vmatprep.mubr.f32.mxu0 %v348
    %794 = vmatmul.mubr.f32.gmra.mrb[0].mxu0 %v347
    %v795 = vpop.f32.mrb[0].mxu0
    %v796 = vadd.f32 %v652, %v795
    %v797 = vpop.f32.mrb[0].mxu0
    %798 = vmatprep.mubr.f32.mxu0 %v354
    %799 = vmatmul.mubr.f32.gmra.mrb[0].mxu0 %v353
    %v800 = vpop.f32.mrb[0].mxu0
    %v801 = vadd.f32 %v652, %v800
    %v802 = vpop.f32.mrb[0].mxu0
    %803 = vmatprep.mubr.f32.mxu0 %v360
    %804 = vmatmul.mubr.f32.gmra.mrb[0].mxu0 %v359
    %v805 = vpop.f32.mrb[0].mxu0
    %v806 = vadd.f32 %v652, %v805
    %v807 = vpop.f32.mrb[0].mxu0
    %808 = vmatprep.mubr.f32.mxu0 %v366
    %809 = vmatmul.mubr.f32.gmra.mrb[0].mxu0 %v365
    %v810 = vpop.f32.mrb[0].mxu0
    %v811 = vadd.f32 %v652, %v810
    %v812 = vpop.f32.mrb[0].mxu0
    %813 = vmatprep.mubr.f32.mxu0 %v372
    %814 = vmatmul.mubr.f32.gmra.mrb[0].mxu0 %v371
    %v815 = vpop.f32.mrb[0].mxu0
    %v816 = vadd.f32 %v652, %v815
    %v817 = vpop.f32.mrb[0].mxu0
    %818 = vmatprep.mubr.f32.mxu0 %v378
    %819 = vmatmul.mubr.f32.gmra.mrb[0].mxu0 %v377
    %v820 = vpop.f32.mrb[0].mxu0
    %v821 = vadd.f32 %v652, %v820
    %v822 = vpop.f32.mrb[0].mxu0
    %823 = vmatprep.mubr.f32.mxu0 %v384
    %824 = vmatmul.mubr.f32.gmra.mrb[0].mxu0 %v383
    %v825 = vpop.f32.mrb[0].mxu0
    %v826 = vadd.f32 %v652, %v825
    %v827 = vpop.f32.mrb[0].mxu0
    %828 = vmatprep.mubr.f32.mxu0 %v390
    %829 = vmatmul.mubr.f32.gmra.mrb[0].mxu0 %v389
    %v830 = vpop.f32.mrb[0].mxu0
    %v831 = vadd.f32 %v652, %v830
    %v832 = vpop.f32.mrb[0].mxu0
    %833 = vmatprep.mubr.f32.mxu0 %v396
    %834 = vmatmul.mubr.f32.gmra.mrb[0].mxu0 %v395
    %v835 = vpop.f32.mrb[0].mxu0
    %v836 = vadd.f32 %v652, %v835
    %v837 = vpop.f32.mrb[0].mxu0
    %838 = vmatprep.mubr.f32.mxu0 %v402
    %839 = vmatmul.mubr.f32.gmra.mrb[0].mxu0 %v401
    %v840 = vpop.f32.mrb[0].mxu0
    %v841 = vadd.f32 %v652, %v840
    %v842 = vpop.f32.mrb[0].mxu0
    %843 = vmatprep.mubr.f32.mxu0 %v408
    %844 = vmatmul.mubr.f32.gmra.mrb[0].mxu0 %v407
    %v845 = vpop.f32.mrb[0].mxu0
    %v846 = vadd.f32 %v652, %v845
    %v847 = vpop.f32.mrb[0].mxu0
    %848 = vmatprep.mubr.f32.mxu0 %v414
    %849 = vmatmul.mubr.f32.gmra.mrb[0].mxu0 %v413
    %v850 = vpop.f32.mrb[0].mxu0
    %v851 = vadd.f32 %v652, %v850
    %v852 = vpop.f32.mrb[0].mxu0
    %853 = vmatprep.mubr.f32.mxu0 %v420
    %854 = vmatmul.mubr.f32.gmra.mrb[0].mxu0 %v419
    %v855 = vpop.f32.mrb[0].mxu0
    %v856 = vadd.f32 %v652, %v855
    %v857 = vpop.f32.mrb[0].mxu0
    %858 = vmatprep.mubr.f32.mxu0 %v426
    %859 = vmatmul.mubr.f32.gmra.mrb[0].mxu0 %v425
    %v860 = vpop.f32.mrb[0].mxu0
    %v861 = vadd.f32 %v652, %v860
    %v862 = vpop.f32.mrb[0].mxu0
    %863 = vmatprep.mubr.f32.mxu0 %v432
    %864 = vmatmul.mubr.f32.gmra.mrb[0].mxu0 %v431
    %v865 = vpop.f32.mrb[0].mxu0
    %v866 = vadd.f32 %v652, %v865
    %v867 = vpop.f32.mrb[0].mxu0
    %868 = vmatprep.mubr.f32.mxu0 %v438
    %869 = vmatmul.mubr.f32.gmra.mrb[0].mxu0 %v437
    %v870 = vpop.f32.mrb[0].mxu0
    %v871 = vadd.f32 %v652, %v870
    %v872 = vpop.f32.mrb[0].mxu0
    %873 = vmatprep.mubr.f32.mxu0 %v444
    %874 = vmatmul.mubr.f32.gmra.mrb[0].mxu0 %v443
    %v875 = vpop.f32.mrb[0].mxu0
    %v876 = vadd.f32 %v652, %v875
    %v877 = vpop.f32.mrb[0].mxu0
    %878 = vmatprep.mubr.f32.mxu0 %v450
    %879 = vmatmul.mubr.f32.gmra.mrb[0].mxu0 %v449
    %v880 = vpop.f32.mrb[0].mxu0
    %v881 = vadd.f32 %v652, %v880
    %v882 = vpop.f32.mrb[0].mxu0
    %883 = vmatprep.mubr.f32.mxu0 %v456
    %884 = vmatmul.mubr.f32.gmra.mrb[0].mxu0 %v455
    %v885 = vpop.f32.mrb[0].mxu0
    %v886 = vadd.f32 %v652, %v885
    %v887 = vpop.f32.mrb[0].mxu0
    %888 = vmatprep.mubr.f32.mxu0 %v462
    %889 = vmatmul.mubr.f32.gmra.mrb[0].mxu0 %v461
    %v890 = vpop.f32.mrb[0].mxu0
    %v891 = vadd.f32 %v652, %v890
    %v892 = vpop.f32.mrb[0].mxu0
    %893 = vmatprep.mubr.f32.mxu0 %v468
    %894 = vmatmul.mubr.f32.gmra.mrb[0].mxu0 %v467
    %v895 = vpop.f32.mrb[0].mxu0
    %v896 = vadd.f32 %v652, %v895
    %v897 = vpop.f32.mrb[0].mxu0
    %898 = vmatprep.mubr.f32.mxu0 %v474
    %899 = vmatmul.mubr.f32.gmra.mrb[0].mxu0 %v473
    %v900 = vpop.f32.mrb[0].mxu0
    %v901 = vadd.f32 %v652, %v900
    %v902 = vpop.f32.mrb[0].mxu0
    %903 = vmatprep.mubr.f32.mxu0 %v480
    %904 = vmatmul.mubr.f32.gmra.mrb[0].mxu0 %v479
    %v905 = vpop.f32.mrb[0].mxu0
    %v906 = vadd.f32 %v652, %v905
    %v907 = vpop.f32.mrb[0].mxu0
    %908 = vmatprep.mubr.f32.mxu0 %v486
    %909 = vmatmul.mubr.f32.gmra.mrb[0].mxu0 %v485
    %v910 = vpop.f32.mrb[0].mxu0
    %v911 = vadd.f32 %v652, %v910
    %v912 = vpop.f32.mrb[0].mxu0
    %913 = vmatprep.mubr.f32.mxu0 %v492
    %914 = vmatmul.mubr.f32.gmra.mrb[0].mxu0 %v491
    %v915 = vpop.f32.mrb[0].mxu0
    %v916 = vadd.f32 %v652, %v915
    %v917 = vpop.f32.mrb[0].mxu0
    %918 = vmatprep.mubr.f32.mxu0 %v498
    %919 = vmatmul.mubr.f32.gmra.mrb[0].mxu0 %v497
    %v920 = vpop.f32.mrb[0].mxu0
    %v921 = vadd.f32 %v652, %v920
    %v922 = vpop.f32.mrb[0].mxu0
    %923 = vmatprep.mubr.f32.mxu0 %v504
    %924 = vmatmul.mubr.f32.gmra.mrb[0].mxu0 %v503
    %v925 = vpop.f32.mrb[0].mxu0
    %v926 = vadd.f32 %v652, %v925
    %v927 = vpop.f32.mrb[0].mxu0
    %928 = vmatprep.mubr.f32.mxu0 %v510
    %929 = vmatmul.mubr.f32.gmra.mrb[0].mxu0 %v509
    %v930 = vpop.f32.mrb[0].mxu0
    %v931 = vadd.f32 %v652, %v930
    %v932 = vpop.f32.mrb[0].mxu0
    %933 = vmatprep.mubr.f32.mxu0 %v516
    %934 = vmatmul.mubr.f32.gmra.mrb[0].mxu0 %v515
    %v935 = vpop.f32.mrb[0].mxu0
    %v936 = vadd.f32 %v652, %v935
    %v937 = vpop.f32.mrb[0].mxu0
    %938 = vmatprep.mubr.f32.mxu0 %v522
    %939 = vmatmul.mubr.f32.gmra.mrb[0].mxu0 %v521
    %v940 = vpop.f32.mrb[0].mxu0
    %v941 = vadd.f32 %v652, %v940
    %v942 = vpop.f32.mrb[0].mxu0
    %943 = vmatprep.mubr.f32.mxu0 %v528
    %944 = vmatmul.mubr.f32.gmra.mrb[0].mxu0 %v527
    %v945 = vpop.f32.mrb[0].mxu0
    %v946 = vadd.f32 %v652, %v945
    %v947 = vpop.f32.mrb[0].mxu0
    %948 = vmatprep.mubr.f32.mxu0 %v534
    %949 = vmatmul.mubr.f32.gmra.mrb[0].mxu0 %v533
    %v950 = vpop.f32.mrb[0].mxu0
    %v951 = vadd.f32 %v652, %v950
    %v952 = vpop.f32.mrb[0].mxu0
    %953 = vmatprep.mubr.f32.mxu0 %v540
    %954 = vmatmul.mubr.f32.gmra.mrb[0].mxu0 %v539
    %v955 = vpop.f32.mrb[0].mxu0
    %v956 = vadd.f32 %v652, %v955
    %v957 = vpop.f32.mrb[0].mxu0
    %958 = vmatprep.mubr.f32.mxu0 %v546
    %959 = vmatmul.mubr.f32.gmra.mrb[0].mxu0 %v545
    %v960 = vpop.f32.mrb[0].mxu0
    %v961 = vadd.f32 %v652, %v960
    %v962 = vpop.f32.mrb[0].mxu0
    %963 = vdwg.mxu0
    %964 = vmatprep.subr.mxu0 0.0
    %965 = vmatpush1.msra.mxu0 %v583
    %966 = vmatprep.subr.mxu0 0.0
    %967 = vmatpush1.msra.mxu0 %v584
    %968 = vmatprep.subr.mxu0 0.0
    %969 = vmatpush1.msra.mxu0 %v585
    %970 = vmatprep.subr.mxu0 0.0
    %971 = vmatpush1.msra.mxu0 %v586
    %972 = vmatprep.subr.mxu0 0.0
    %973 = vmatpush1.msra.mxu0 %v587
    %974 = vmatprep.subr.mxu0 0.0
    %975 = vmatpush1.msra.mxu0 %v588
    %976 = vmatprep.subr.mxu0 0.0
    %977 = vmatpush1.msra.mxu0 %v589
    %978 = vmatprep.subr.mxu0 0.0
    %979 = vmatpush1.msra.mxu0 %v590
    %980 = vmatprep.subr.mxu0 0.0
    %981 = vmatpush1.msra.mxu0 %v591
    %982 = vmatprep.subr.mxu0 0.0
    %983 = vmatpush1.msra.mxu0 %v592
    %984 = vmatprep.subr.mxu0 0.0
    %985 = vmatpush1.msra.mxu0 %v593
    %986 = vmatprep.subr.mxu0 0.0
    %987 = vmatpush1.msra.mxu0 %v594
    %988 = vmatprep.subr.mxu0 0.0
    %989 = vmatpush1.msra.mxu0 %v595
    %990 = vmatprep.subr.mxu0 0.0
    %991 = vmatpush1.msra.mxu0 %v596
    %992 = vmatprep.subr.mxu0 0.0
    %993 = vmatpush1.msra.mxu0 %v597
    %994 = vmatprep.subr.mxu0 0.0
    %995 = vmatpush1.msra.mxu0 %v598
    %996 = vmatprep.subr.mxu0 0.0
    %997 = vmatpush1.msra.mxu0 %v599
    %998 = vmatprep.subr.mxu0 0.0
    %999 = vmatpush1.msra.mxu0 %v600
    %1000 = vmatprep.subr.mxu0 0.0
    %1001 = vmatpush1.msra.mxu0 %v601
    %1002 = vmatprep.subr.mxu0 0.0
    %1003 = vmatpush1.msra.mxu0 %v602
    %1004 = vmatprep.subr.mxu0 0.0
    %1005 = vmatpush1.msra.mxu0 %v603
    %1006 = vmatprep.subr.mxu0 0.0
    %1007 = vmatpush1.msra.mxu0 %v604
    %1008 = vmatprep.subr.mxu0 0.0
    %1009 = vmatpush1.msra.mxu0 %v605
    %1010 = vmatprep.subr.mxu0 0.0
    %1011 = vmatpush1.msra.mxu0 %v606
    %1012 = vmatprep.subr.mxu0 0.0
    %1013 = vmatpush1.msra.mxu0 %v607
    %1014 = vmatprep.subr.mxu0 0.0
    %1015 = vmatpush1.msra.mxu0 %v608
    %1016 = vmatprep.subr.mxu0 0.0
    %1017 = vmatpush1.msra.mxu0 %v609
    %1018 = vmatprep.subr.mxu0 0.0
    %1019 = vmatpush1.msra.mxu0 %v610
    %1020 = vmatprep.subr.mxu0 0.0
    %1021 = vmatpush1.msra.mxu0 %v611
    %1022 = vmatprep.subr.mxu0 0.0
    %1023 = vmatpush1.msra.mxu0 %v612
    %1024 = vmatprep.subr.mxu0 0.0
    %1025 = vmatpush1.msra.mxu0 %v613
    %1026 = vmatprep.subr.mxu0 0.0
    %1027 = vmatpush1.msra.mxu0 %v614
    %1028 = vmatprep.mubr.f32.mxu0 %v260
    %1029 = vmatmul.mubr.f32.gmra.mrb[0].mxu0 %v259
    %v1030 = vpop.f32.mrb[0].mxu0
    %v1031 = vadd.f32 %v721, %v1030
    %v1032 = vpop.f32.mrb[0].mxu0
    %1033 = vmatprep.mubr.f32.mxu0 %v266
    %1034 = vmatmul.mubr.f32.gmra.mrb[0].mxu0 %v265
    %v1035 = vpop.f32.mrb[0].mxu0
    %v1036 = vadd.f32 %v726, %v1035
    %v1037 = vpop.f32.mrb[0].mxu0
    %1038 = vmatprep.mubr.f32.mxu0 %v272
    %1039 = vmatmul.mubr.f32.gmra.mrb[0].mxu0 %v271
    %v1040 = vpop.f32.mrb[0].mxu0
    %v1041 = vadd.f32 %v731, %v1040
    %v1042 = vpop.f32.mrb[0].mxu0
    %1043 = vmatprep.mubr.f32.mxu0 %v278
    %1044 = vmatmul.mubr.f32.gmra.mrb[0].mxu0 %v277
    %v1045 = vpop.f32.mrb[0].mxu0
    %v1046 = vadd.f32 %v736, %v1045
    %v1047 = vpop.f32.mrb[0].mxu0
    %1048 = vmatprep.mubr.f32.mxu0 %v284
    %1049 = vmatmul.mubr.f32.gmra.mrb[0].mxu0 %v283
    %v1050 = vpop.f32.mrb[0].mxu0
    %v1051 = vadd.f32 %v741, %v1050
    %v1052 = vpop.f32.mrb[0].mxu0
    %1053 = vmatprep.mubr.f32.mxu0 %v290
    %1054 = vmatmul.mubr.f32.gmra.mrb[0].mxu0 %v289
    %v1055 = vpop.f32.mrb[0].mxu0
    %v1056 = vadd.f32 %v746, %v1055
    %v1057 = vpop.f32.mrb[0].mxu0
    %1058 = vmatprep.mubr.f32.mxu0 %v296
    %1059 = vmatmul.mubr.f32.gmra.mrb[0].mxu0 %v295
    %v1060 = vpop.f32.mrb[0].mxu0
    %v1061 = vadd.f32 %v751, %v1060
    %v1062 = vpop.f32.mrb[0].mxu0
    %1063 = vmatprep.mubr.f32.mxu0 %v302
    %1064 = vmatmul.mubr.f32.gmra.mrb[0].mxu0 %v301
    %v1065 = vpop.f32.mrb[0].mxu0
    %v1066 = vadd.f32 %v756, %v1065
    %v1067 = vpop.f32.mrb[0].mxu0
    %1068 = vmatprep.mubr.f32.mxu0 %v308
    %1069 = vmatmul.mubr.f32.gmra.mrb[0].mxu0 %v307
    %v1070 = vpop.f32.mrb[0].mxu0
    %v1071 = vadd.f32 %v761, %v1070
    %v1072 = vpop.f32.mrb[0].mxu0
    %1073 = vmatprep.mubr.f32.mxu0 %v314
    %1074 = vmatmul.mubr.f32.gmra.mrb[0].mxu0 %v313
    %v1075 = vpop.f32.mrb[0].mxu0
    %v1076 = vadd.f32 %v766, %v1075
    %v1077 = vpop.f32.mrb[0].mxu0
    %1078 = vmatprep.mubr.f32.mxu0 %v320
    %1079 = vmatmul.mubr.f32.gmra.mrb[0].mxu0 %v319
    %v1080 = vpop.f32.mrb[0].mxu0
    %v1081 = vadd.f32 %v771, %v1080
    %v1082 = vpop.f32.mrb[0].mxu0
    %1083 = vmatprep.mubr.f32.mxu0 %v326
    %1084 = vmatmul.mubr.f32.gmra.mrb[0].mxu0 %v325
    %v1085 = vpop.f32.mrb[0].mxu0
    %v1086 = vadd.f32 %v776, %v1085
    %v1087 = vpop.f32.mrb[0].mxu0
    %1088 = vmatprep.mubr.f32.mxu0 %v332
    %1089 = vmatmul.mubr.f32.gmra.mrb[0].mxu0 %v331
    %v1090 = vpop.f32.mrb[0].mxu0
    %v1091 = vadd.f32 %v781, %v1090
    %v1092 = vpop.f32.mrb[0].mxu0
    %1093 = vmatprep.mubr.f32.mxu0 %v338
    %1094 = vmatmul.mubr.f32.gmra.mrb[0].mxu0 %v337
    %v1095 = vpop.f32.mrb[0].mxu0
    %v1096 = vadd.f32 %v786, %v1095
    %v1097 = vpop.f32.mrb[0].mxu0
    %1098 = vmatprep.mubr.f32.mxu0 %v344
    %1099 = vmatmul.mubr.f32.gmra.mrb[0].mxu0 %v343
    %v1100 = vpop.f32.mrb[0].mxu0
    %v1101 = vadd.f32 %v791, %v1100
    %v1102 = vpop.f32.mrb[0].mxu0
    %1103 = vmatprep.mubr.f32.mxu0 %v350
    %1104 = vmatmul.mubr.f32.gmra.mrb[0].mxu0 %v349
    %v1105 = vpop.f32.mrb[0].mxu0
    %v1106 = vadd.f32 %v796, %v1105
    %v1107 = vpop.f32.mrb[0].mxu0
    %1108 = vmatprep.mubr.f32.mxu0 %v356
    %1109 = vmatmul.mubr.f32.gmra.mrb[0].mxu0 %v355
    %v1110 = vpop.f32.mrb[0].mxu0
    %v1111 = vadd.f32 %v801, %v1110
    %v1112 = vpop.f32.mrb[0].mxu0
    %1113 = vmatprep.mubr.f32.mxu0 %v362
    %1114 = vmatmul.mubr.f32.gmra.mrb[0].mxu0 %v361
    %v1115 = vpop.f32.mrb[0].mxu0
    %v1116 = vadd.f32 %v806, %v1115
    %v1117 = vpop.f32.mrb[0].mxu0
    %1118 = vmatprep.mubr.f32.mxu0 %v368
    %1119 = vmatmul.mubr.f32.gmra.mrb[0].mxu0 %v367
    %v1120 = vpop.f32.mrb[0].mxu0
    %v1121 = vadd.f32 %v811, %v1120
    %v1122 = vpop.f32.mrb[0].mxu0
    %1123 = vmatprep.mubr.f32.mxu0 %v374
    %1124 = vmatmul.mubr.f32.gmra.mrb[0].mxu0 %v373
    %v1125 = vpop.f32.mrb[0].mxu0
    %v1126 = vadd.f32 %v816, %v1125
    %v1127 = vpop.f32.mrb[0].mxu0
    %1128 = vmatprep.mubr.f32.mxu0 %v380
    %1129 = vmatmul.mubr.f32.gmra.mrb[0].mxu0 %v379
    %v1130 = vpop.f32.mrb[0].mxu0
    %v1131 = vadd.f32 %v821, %v1130
    %v1132 = vpop.f32.mrb[0].mxu0
    %1133 = vmatprep.mubr.f32.mxu0 %v386
    %1134 = vmatmul.mubr.f32.gmra.mrb[0].mxu0 %v385
    %v1135 = vpop.f32.mrb[0].mxu0
    %v1136 = vadd.f32 %v826, %v1135
    %v1137 = vpop.f32.mrb[0].mxu0
    %1138 = vmatprep.mubr.f32.mxu0 %v392
    %1139 = vmatmul.mubr.f32.gmra.mrb[0].mxu0 %v391
    %v1140 = vpop.f32.mrb[0].mxu0
    %v1141 = vadd.f32 %v831, %v1140
    %v1142 = vpop.f32.mrb[0].mxu0
    %1143 = vmatprep.mubr.f32.mxu0 %v398
    %1144 = vmatmul.mubr.f32.gmra.mrb[0].mxu0 %v397
    %v1145 = vpop.f32.mrb[0].mxu0
    %v1146 = vadd.f32 %v836, %v1145
    %v1147 = vpop.f32.mrb[0].mxu0
    %1148 = vmatprep.mubr.f32.mxu0 %v404
    %1149 = vmatmul.mubr.f32.gmra.mrb[0].mxu0 %v403
    %v1150 = vpop.f32.mrb[0].mxu0
    %v1151 = vadd.f32 %v841, %v1150
    %v1152 = vpop.f32.mrb[0].mxu0
    %1153 = vmatprep.mubr.f32.mxu0 %v410
    %1154 = vmatmul.mubr.f32.gmra.mrb[0].mxu0 %v409
    %v1155 = vpop.f32.mrb[0].mxu0
    %v1156 = vadd.f32 %v846, %v1155
    %v1157 = vpop.f32.mrb[0].mxu0
    %1158 = vmatprep.mubr.f32.mxu0 %v416
    %1159 = vmatmul.mubr.f32.gmra.mrb[0].mxu0 %v415
    %v1160 = vpop.f32.mrb[0].mxu0
    %v1161 = vadd.f32 %v851, %v1160
    %v1162 = vpop.f32.mrb[0].mxu0
    %1163 = vmatprep.mubr.f32.mxu0 %v422
    %1164 = vmatmul.mubr.f32.gmra.mrb[0].mxu0 %v421
    %v1165 = vpop.f32.mrb[0].mxu0
    %v1166 = vadd.f32 %v856, %v1165
    %v1167 = vpop.f32.mrb[0].mxu0
    %1168 = vmatprep.mubr.f32.mxu0 %v428
    %1169 = vmatmul.mubr.f32.gmra.mrb[0].mxu0 %v427
    %v1170 = vpop.f32.mrb[0].mxu0
    %v1171 = vadd.f32 %v861, %v1170
    %v1172 = vpop.f32.mrb[0].mxu0
    %1173 = vmatprep.mubr.f32.mxu0 %v434
    %1174 = vmatmul.mubr.f32.gmra.mrb[0].mxu0 %v433
    %v1175 = vpop.f32.mrb[0].mxu0
    %v1176 = vadd.f32 %v866, %v1175
    %v1177 = vpop.f32.mrb[0].mxu0
    %1178 = vmatprep.mubr.f32.mxu0 %v440
    %1179 = vmatmul.mubr.f32.gmra.mrb[0].mxu0 %v439
    %v1180 = vpop.f32.mrb[0].mxu0
    %v1181 = vadd.f32 %v871, %v1180
    %v1182 = vpop.f32.mrb[0].mxu0
    %1183 = vmatprep.mubr.f32.mxu0 %v446
    %1184 = vmatmul.mubr.f32.gmra.mrb[0].mxu0 %v445
    %v1185 = vpop.f32.mrb[0].mxu0
    %v1186 = vadd.f32 %v876, %v1185
    %v1187 = vpop.f32.mrb[0].mxu0
    %1188 = vmatprep.mubr.f32.mxu0 %v452
    %1189 = vmatmul.mubr.f32.gmra.mrb[0].mxu0 %v451
    %v1190 = vpop.f32.mrb[0].mxu0
    %v1191 = vadd.f32 %v881, %v1190
    %v1192 = vpop.f32.mrb[0].mxu0
    %1193 = vmatprep.mubr.f32.mxu0 %v458
    %1194 = vmatmul.mubr.f32.gmra.mrb[0].mxu0 %v457
    %v1195 = vpop.f32.mrb[0].mxu0
    %v1196 = vadd.f32 %v886, %v1195
    %v1197 = vpop.f32.mrb[0].mxu0
    %1198 = vmatprep.mubr.f32.mxu0 %v464
    %1199 = vmatmul.mubr.f32.gmra.mrb[0].mxu0 %v463
    %v1200 = vpop.f32.mrb[0].mxu0
    %v1201 = vadd.f32 %v891, %v1200
    %v1202 = vpop.f32.mrb[0].mxu0
    %1203 = vmatprep.mubr.f32.mxu0 %v470
    %1204 = vmatmul.mubr.f32.gmra.mrb[0].mxu0 %v469
    %v1205 = vpop.f32.mrb[0].mxu0
    %v1206 = vadd.f32 %v896, %v1205
    %v1207 = vpop.f32.mrb[0].mxu0
    %1208 = vmatprep.mubr.f32.mxu0 %v476
    %1209 = vmatmul.mubr.f32.gmra.mrb[0].mxu0 %v475
    %v1210 = vpop.f32.mrb[0].mxu0
    %v1211 = vadd.f32 %v901, %v1210
    %v1212 = vpop.f32.mrb[0].mxu0
    %1213 = vmatprep.mubr.f32.mxu0 %v482
    %1214 = vmatmul.mubr.f32.gmra.mrb[0].mxu0 %v481
    %v1215 = vpop.f32.mrb[0].mxu0
    %v1216 = vadd.f32 %v906, %v1215
    %v1217 = vpop.f32.mrb[0].mxu0
    %1218 = vmatprep.mubr.f32.mxu0 %v488
    %1219 = vmatmul.mubr.f32.gmra.mrb[0].mxu0 %v487
    %v1220 = vpop.f32.mrb[0].mxu0
    %v1221 = vadd.f32 %v911, %v1220
    %v1222 = vpop.f32.mrb[0].mxu0
    %1223 = vmatprep.mubr.f32.mxu0 %v494
    %1224 = vmatmul.mubr.f32.gmra.mrb[0].mxu0 %v493
    %v1225 = vpop.f32.mrb[0].mxu0
    %v1226 = vadd.f32 %v916, %v1225
    %v1227 = vpop.f32.mrb[0].mxu0
    %1228 = vmatprep.mubr.f32.mxu0 %v500
    %1229 = vmatmul.mubr.f32.gmra.mrb[0].mxu0 %v499
    %v1230 = vpop.f32.mrb[0].mxu0
    %v1231 = vadd.f32 %v921, %v1230
    %v1232 = vpop.f32.mrb[0].mxu0
    %1233 = vmatprep.mubr.f32.mxu0 %v506
    %1234 = vmatmul.mubr.f32.gmra.mrb[0].mxu0 %v505
    %v1235 = vpop.f32.mrb[0].mxu0
    %v1236 = vadd.f32 %v926, %v1235
    %v1237 = vpop.f32.mrb[0].mxu0
    %1238 = vmatprep.mubr.f32.mxu0 %v512
    %1239 = vmatmul.mubr.f32.gmra.mrb[0].mxu0 %v511
    %v1240 = vpop.f32.mrb[0].mxu0
    %v1241 = vadd.f32 %v931, %v1240
    %v1242 = vpop.f32.mrb[0].mxu0
    %1243 = vmatprep.mubr.f32.mxu0 %v518
    %1244 = vmatmul.mubr.f32.gmra.mrb[0].mxu0 %v517
    %v1245 = vpop.f32.mrb[0].mxu0
    %v1246 = vadd.f32 %v936, %v1245
    %v1247 = vpop.f32.mrb[0].mxu0
    %1248 = vmatprep.mubr.f32.mxu0 %v524
    %1249 = vmatmul.mubr.f32.gmra.mrb[0].mxu0 %v523
    %v1250 = vpop.f32.mrb[0].mxu0
    %v1251 = vadd.f32 %v941, %v1250
    %v1252 = vpop.f32.mrb[0].mxu0
    %1253 = vmatprep.mubr.f32.mxu0 %v530
    %1254 = vmatmul.mubr.f32.gmra.mrb[0].mxu0 %v529
    %v1255 = vpop.f32.mrb[0].mxu0
    %v1256 = vadd.f32 %v946, %v1255
    %v1257 = vpop.f32.mrb[0].mxu0
    %1258 = vmatprep.mubr.f32.mxu0 %v536
    %1259 = vmatmul.mubr.f32.gmra.mrb[0].mxu0 %v535
    %v1260 = vpop.f32.mrb[0].mxu0
    %v1261 = vadd.f32 %v951, %v1260
    %v1262 = vpop.f32.mrb[0].mxu0
    %1263 = vmatprep.mubr.f32.mxu0 %v542
    %1264 = vmatmul.mubr.f32.gmra.mrb[0].mxu0 %v541
    %v1265 = vpop.f32.mrb[0].mxu0
    %v1266 = vadd.f32 %v956, %v1265
    %v1267 = vpop.f32.mrb[0].mxu0
    %1268 = vmatprep.mubr.f32.mxu0 %v548
    %1269 = vmatmul.mubr.f32.gmra.mrb[0].mxu0 %v547
    %v1270 = vpop.f32.mrb[0].mxu0
    %v1271 = vadd.f32 %v961, %v1270
    %v1272 = vpop.f32.mrb[0].mxu0
    %1273 = vdwg.mxu0
    %1274 = vmatprep.subr.mxu0 0.0
    %1275 = vmatpush1.msra.mxu0 %v615
    %1276 = vmatprep.subr.mxu0 0.0
    %1277 = vmatpush1.msra.mxu0 %v616
    %1278 = vmatprep.subr.mxu0 0.0
    %1279 = vmatpush1.msra.mxu0 %v617
    %1280 = vmatprep.subr.mxu0 0.0
    %1281 = vmatpush1.msra.mxu0 %v618
    %1282 = vmatprep.subr.mxu0 0.0
    %1283 = vmatpush1.msra.mxu0 %v619
    %1284 = vmatprep.subr.mxu0 0.0
    %1285 = vmatpush1.msra.mxu0 %v620
    %1286 = vmatprep.subr.mxu0 0.0
    %1287 = vmatpush1.msra.mxu0 %v621
    %1288 = vmatprep.subr.mxu0 0.0
    %1289 = vmatpush1.msra.mxu0 %v622
    %1290 = vmatprep.subr.mxu0 0.0
    %1291 = vmatpush1.msra.mxu0 %v623
    %1292 = vmatprep.subr.mxu0 0.0
    %1293 = vmatpush1.msra.mxu0 %v624
    %1294 = vmatprep.subr.mxu0 0.0
    %1295 = vmatpush1.msra.mxu0 %v625
    %1296 = vmatprep.subr.mxu0 0.0
    %1297 = vmatpush1.msra.mxu0 %v626
    %1298 = vmatprep.subr.mxu0 0.0
    %1299 = vmatpush1.msra.mxu0 %v627
    %1300 = vmatprep.subr.mxu0 0.0
    %1301 = vmatpush1.msra.mxu0 %v628
    %1302 = vmatprep.subr.mxu0 0.0
    %1303 = vmatpush1.msra.mxu0 %v629
    %1304 = vmatprep.subr.mxu0 0.0
    %1305 = vmatpush1.msra.mxu0 %v630
    %1306 = vmatprep.subr.mxu0 0.0
    %1307 = vmatpush1.msra.mxu0 %v631
    %1308 = vmatprep.subr.mxu0 0.0
    %1309 = vmatpush1.msra.mxu0 %v632
    %1310 = vmatprep.subr.mxu0 0.0
    %1311 = vmatpush1.msra.mxu0 %v633
    %1312 = vmatprep.subr.mxu0 0.0
    %1313 = vmatpush1.msra.mxu0 %v634
    %1314 = vmatprep.subr.mxu0 0.0
    %1315 = vmatpush1.msra.mxu0 %v635
    %1316 = vmatprep.subr.mxu0 0.0
    %1317 = vmatpush1.msra.mxu0 %v636
    %1318 = vmatprep.subr.mxu0 0.0
    %1319 = vmatpush1.msra.mxu0 %v637
    %1320 = vmatprep.subr.mxu0 0.0
    %1321 = vmatpush1.msra.mxu0 %v638
    %1322 = vmatprep.subr.mxu0 0.0
    %1323 = vmatpush1.msra.mxu0 %v639
    %1324 = vmatprep.subr.mxu0 0.0
    %1325 = vmatpush1.msra.mxu0 %v640
    %1326 = vmatprep.subr.mxu0 0.0
    %1327 = vmatpush1.msra.mxu0 %v641
    %1328 = vmatprep.subr.mxu0 0.0
    %1329 = vmatpush1.msra.mxu0 %v642
    %1330 = vmatprep.subr.mxu0 0.0
    %1331 = vmatpush1.msra.mxu0 %v643
    %1332 = vmatprep.subr.mxu0 0.0
    %1333 = vmatpush1.msra.mxu0 %v644
    %1334 = vmatprep.subr.mxu0 0.0
    %1335 = vmatpush1.msra.mxu0 %v645
    %1336 = vmatprep.subr.mxu0 0.0
    %1337 = vmatpush1.msra.mxu0 %v646
    %1338 = vmatprep.mubr.f32.mxu0 %v262
    %1339 = vmatmul.mubr.f32.gmra.mrb[0].mxu0 %v261
    %v1340 = vpop.f32.mrb[0].mxu0
    %v1341 = vadd.f32 %v1031, %v1340
    %v1342 = vpop.f32.mrb[0].mxu0
    %1343 = vmatprep.mubr.f32.mxu0 %v268
    %1344 = vmatmul.mubr.f32.gmra.mrb[0].mxu0 %v267
    %v1345 = vpop.f32.mrb[0].mxu0
    %v1346 = vadd.f32 %v1036, %v1345
    %v1347 = vpop.f32.mrb[0].mxu0
    %1348 = vmatprep.mubr.f32.mxu0 %v274
    %1349 = vmatmul.mubr.f32.gmra.mrb[0].mxu0 %v273
    %v1350 = vpop.f32.mrb[0].mxu0
    %v1351 = vadd.f32 %v1041, %v1350
    %v1352 = vpop.f32.mrb[0].mxu0
    %1353 = vmatprep.mubr.f32.mxu0 %v280
    %1354 = vmatmul.mubr.f32.gmra.mrb[0].mxu0 %v279
    %v1355 = vpop.f32.mrb[0].mxu0
    %v1356 = vadd.f32 %v1046, %v1355
    %v1357 = vpop.f32.mrb[0].mxu0
    %1358 = vmatprep.mubr.f32.mxu0 %v286
    %1359 = vmatmul.mubr.f32.gmra.mrb[0].mxu0 %v285
    %v1360 = vpop.f32.mrb[0].mxu0
    %v1361 = vadd.f32 %v1051, %v1360
    %v1362 = vpop.f32.mrb[0].mxu0
    %1363 = vmatprep.mubr.f32.mxu0 %v292
    %1364 = vmatmul.mubr.f32.gmra.mrb[0].mxu0 %v291
    %v1365 = vpop.f32.mrb[0].mxu0
    %v1366 = vadd.f32 %v1056, %v1365
    %v1367 = vpop.f32.mrb[0].mxu0
    %1368 = vmatprep.mubr.f32.mxu0 %v298
    %1369 = vmatmul.mubr.f32.gmra.mrb[0].mxu0 %v297
    %v1370 = vpop.f32.mrb[0].mxu0
    %v1371 = vadd.f32 %v1061, %v1370
    %v1372 = vpop.f32.mrb[0].mxu0
    %1373 = vmatprep.mubr.f32.mxu0 %v304
    %1374 = vmatmul.mubr.f32.gmra.mrb[0].mxu0 %v303
    %v1375 = vpop.f32.mrb[0].mxu0
    %v1376 = vadd.f32 %v1066, %v1375
    %v1377 = vpop.f32.mrb[0].mxu0
    %1378 = vmatprep.mubr.f32.mxu0 %v310
    %1379 = vmatmul.mubr.f32.gmra.mrb[0].mxu0 %v309
    %v1380 = vpop.f32.mrb[0].mxu0
    %v1381 = vadd.f32 %v1071, %v1380
    %v1382 = vpop.f32.mrb[0].mxu0
    %1383 = vmatprep.mubr.f32.mxu0 %v316
    %1384 = vmatmul.mubr.f32.gmra.mrb[0].mxu0 %v315
    %v1385 = vpop.f32.mrb[0].mxu0
    %v1386 = vadd.f32 %v1076, %v1385
    %v1387 = vpop.f32.mrb[0].mxu0
    %1388 = vmatprep.mubr.f32.mxu0 %v322
    %1389 = vmatmul.mubr.f32.gmra.mrb[0].mxu0 %v321
    %v1390 = vpop.f32.mrb[0].mxu0
    %v1391 = vadd.f32 %v1081, %v1390
    %v1392 = vpop.f32.mrb[0].mxu0
    %1393 = vmatprep.mubr.f32.mxu0 %v328
    %1394 = vmatmul.mubr.f32.gmra.mrb[0].mxu0 %v327
    %v1395 = vpop.f32.mrb[0].mxu0
    %v1396 = vadd.f32 %v1086, %v1395
    %v1397 = vpop.f32.mrb[0].mxu0
    %1398 = vmatprep.mubr.f32.mxu0 %v334
    %1399 = vmatmul.mubr.f32.gmra.mrb[0].mxu0 %v333
    %v1400 = vpop.f32.mrb[0].mxu0
    %v1401 = vadd.f32 %v1091, %v1400
    %v1402 = vpop.f32.mrb[0].mxu0
    %1403 = vmatprep.mubr.f32.mxu0 %v340
    %1404 = vmatmul.mubr.f32.gmra.mrb[0].mxu0 %v339
    %v1405 = vpop.f32.mrb[0].mxu0
    %v1406 = vadd.f32 %v1096, %v1405
    %v1407 = vpop.f32.mrb[0].mxu0
    %1408 = vmatprep.mubr.f32.mxu0 %v346
    %1409 = vmatmul.mubr.f32.gmra.mrb[0].mxu0 %v345
    %v1410 = vpop.f32.mrb[0].mxu0
    %v1411 = vadd.f32 %v1101, %v1410
    %v1412 = vpop.f32.mrb[0].mxu0
    %1413 = vmatprep.mubr.f32.mxu0 %v352
    %1414 = vmatmul.mubr.f32.gmra.mrb[0].mxu0 %v351
    %v1415 = vpop.f32.mrb[0].mxu0
    %v1416 = vadd.f32 %v1106, %v1415
    %v1417 = vpop.f32.mrb[0].mxu0
    %1418 = vmatprep.mubr.f32.mxu0 %v358
    %1419 = vmatmul.mubr.f32.gmra.mrb[0].mxu0 %v357
    %v1420 = vpop.f32.mrb[0].mxu0
    %v1421 = vadd.f32 %v1111, %v1420
    %v1422 = vpop.f32.mrb[0].mxu0
    %1423 = vmatprep.mubr.f32.mxu0 %v364
    %1424 = vmatmul.mubr.f32.gmra.mrb[0].mxu0 %v363
    %v1425 = vpop.f32.mrb[0].mxu0
    %v1426 = vadd.f32 %v1116, %v1425
    %v1427 = vpop.f32.mrb[0].mxu0
    %1428 = vmatprep.mubr.f32.mxu0 %v370
    %1429 = vmatmul.mubr.f32.gmra.mrb[0].mxu0 %v369
    %v1430 = vpop.f32.mrb[0].mxu0
    %v1431 = vadd.f32 %v1121, %v1430
    %v1432 = vpop.f32.mrb[0].mxu0
    %1433 = vmatprep.mubr.f32.mxu0 %v376
    %1434 = vmatmul.mubr.f32.gmra.mrb[0].mxu0 %v375
    %v1435 = vpop.f32.mrb[0].mxu0
    %v1436 = vadd.f32 %v1126, %v1435
    %v1437 = vpop.f32.mrb[0].mxu0
    %1438 = vmatprep.mubr.f32.mxu0 %v382
    %1439 = vmatmul.mubr.f32.gmra.mrb[0].mxu0 %v381
    %v1440 = vpop.f32.mrb[0].mxu0
    %v1441 = vadd.f32 %v1131, %v1440
    %v1442 = vpop.f32.mrb[0].mxu0
    %1443 = vmatprep.mubr.f32.mxu0 %v388
    %1444 = vmatmul.mubr.f32.gmra.mrb[0].mxu0 %v387
    %v1445 = vpop.f32.mrb[0].mxu0
    %v1446 = vadd.f32 %v1136, %v1445
    %v1447 = vpop.f32.mrb[0].mxu0
    %1448 = vmatprep.mubr.f32.mxu0 %v394
    %1449 = vmatmul.mubr.f32.gmra.mrb[0].mxu0 %v393
    %v1450 = vpop.f32.mrb[0].mxu0
    %v1451 = vadd.f32 %v1141, %v1450
    %v1452 = vpop.f32.mrb[0].mxu0
    %1453 = vmatprep.mubr.f32.mxu0 %v400
    %1454 = vmatmul.mubr.f32.gmra.mrb[0].mxu0 %v399
    %v1455 = vpop.f32.mrb[0].mxu0
    %v1456 = vadd.f32 %v1146, %v1455
    %v1457 = vpop.f32.mrb[0].mxu0
    %1458 = vmatprep.mubr.f32.mxu0 %v406
    %1459 = vmatmul.mubr.f32.gmra.mrb[0].mxu0 %v405
    %v1460 = vpop.f32.mrb[0].mxu0
    %v1461 = vadd.f32 %v1151, %v1460
    %v1462 = vpop.f32.mrb[0].mxu0
    %1463 = vmatprep.mubr.f32.mxu0 %v412
    %1464 = vmatmul.mubr.f32.gmra.mrb[0].mxu0 %v411
    %v1465 = vpop.f32.mrb[0].mxu0
    %v1466 = vadd.f32 %v1156, %v1465
    %v1467 = vpop.f32.mrb[0].mxu0
    %1468 = vmatprep.mubr.f32.mxu0 %v418
    %1469 = vmatmul.mubr.f32.gmra.mrb[0].mxu0 %v417
    %v1470 = vpop.f32.mrb[0].mxu0
    %v1471 = vadd.f32 %v1161, %v1470
    %v1472 = vpop.f32.mrb[0].mxu0
    %1473 = vmatprep.mubr.f32.mxu0 %v424
    %1474 = vmatmul.mubr.f32.gmra.mrb[0].mxu0 %v423
    %v1475 = vpop.f32.mrb[0].mxu0
    %v1476 = vadd.f32 %v1166, %v1475
    %v1477 = vpop.f32.mrb[0].mxu0
    %1478 = vmatprep.mubr.f32.mxu0 %v430
    %1479 = vmatmul.mubr.f32.gmra.mrb[0].mxu0 %v429
    %v1480 = vpop.f32.mrb[0].mxu0
    %v1481 = vadd.f32 %v1171, %v1480
    %v1482 = vpop.f32.mrb[0].mxu0
    %1483 = vmatprep.mubr.f32.mxu0 %v436
    %1484 = vmatmul.mubr.f32.gmra.mrb[0].mxu0 %v435
    %v1485 = vpop.f32.mrb[0].mxu0
    %v1486 = vadd.f32 %v1176, %v1485
    %v1487 = vpop.f32.mrb[0].mxu0
    %1488 = vmatprep.mubr.f32.mxu0 %v442
    %1489 = vmatmul.mubr.f32.gmra.mrb[0].mxu0 %v441
    %v1490 = vpop.f32.mrb[0].mxu0
    %v1491 = vadd.f32 %v1181, %v1490
    %v1492 = vpop.f32.mrb[0].mxu0
    %1493 = vmatprep.mubr.f32.mxu0 %v448
    %1494 = vmatmul.mubr.f32.gmra.mrb[0].mxu0 %v447
    %v1495 = vpop.f32.mrb[0].mxu0
    %v1496 = vadd.f32 %v1186, %v1495
    %v1497 = vpop.f32.mrb[0].mxu0
    %1498 = vmatprep.mubr.f32.mxu0 %v454
    %1499 = vmatmul.mubr.f32.gmra.mrb[0].mxu0 %v453
    %v1500 = vpop.f32.mrb[0].mxu0
    %v1501 = vadd.f32 %v1191, %v1500
    %v1502 = vpop.f32.mrb[0].mxu0
    %1503 = vmatprep.mubr.f32.mxu0 %v460
    %1504 = vmatmul.mubr.f32.gmra.mrb[0].mxu0 %v459
    %v1505 = vpop.f32.mrb[0].mxu0
    %v1506 = vadd.f32 %v1196, %v1505
    %v1507 = vpop.f32.mrb[0].mxu0
    %1508 = vmatprep.mubr.f32.mxu0 %v466
    %1509 = vmatmul.mubr.f32.gmra.mrb[0].mxu0 %v465
    %v1510 = vpop.f32.mrb[0].mxu0
    %v1511 = vadd.f32 %v1201, %v1510
    %v1512 = vpop.f32.mrb[0].mxu0
    %1513 = vmatprep.mubr.f32.mxu0 %v472
    %1514 = vmatmul.mubr.f32.gmra.mrb[0].mxu0 %v471
    %v1515 = vpop.f32.mrb[0].mxu0
    %v1516 = vadd.f32 %v1206, %v1515
    %v1517 = vpop.f32.mrb[0].mxu0
    %1518 = vmatprep.mubr.f32.mxu0 %v478
    %1519 = vmatmul.mubr.f32.gmra.mrb[0].mxu0 %v477
    %v1520 = vpop.f32.mrb[0].mxu0
    %v1521 = vadd.f32 %v1211, %v1520
    %v1522 = vpop.f32.mrb[0].mxu0
    %1523 = vmatprep.mubr.f32.mxu0 %v484
    %1524 = vmatmul.mubr.f32.gmra.mrb[0].mxu0 %v483
    %v1525 = vpop.f32.mrb[0].mxu0
    %v1526 = vadd.f32 %v1216, %v1525
    %v1527 = vpop.f32.mrb[0].mxu0
    %1528 = vmatprep.mubr.f32.mxu0 %v490
    %1529 = vmatmul.mubr.f32.gmra.mrb[0].mxu0 %v489
    %v1530 = vpop.f32.mrb[0].mxu0
    %v1531 = vadd.f32 %v1221, %v1530
    %v1532 = vpop.f32.mrb[0].mxu0
    %1533 = vmatprep.mubr.f32.mxu0 %v496
    %1534 = vmatmul.mubr.f32.gmra.mrb[0].mxu0 %v495
    %v1535 = vpop.f32.mrb[0].mxu0
    %v1536 = vadd.f32 %v1226, %v1535
    %v1537 = vpop.f32.mrb[0].mxu0
    %1538 = vmatprep.mubr.f32.mxu0 %v502
    %1539 = vmatmul.mubr.f32.gmra.mrb[0].mxu0 %v501
    %v1540 = vpop.f32.mrb[0].mxu0
    %v1541 = vadd.f32 %v1231, %v1540
    %v1542 = vpop.f32.mrb[0].mxu0
    %1543 = vmatprep.mubr.f32.mxu0 %v508
    %1544 = vmatmul.mubr.f32.gmra.mrb[0].mxu0 %v507
    %v1545 = vpop.f32.mrb[0].mxu0
    %v1546 = vadd.f32 %v1236, %v1545
    %v1547 = vpop.f32.mrb[0].mxu0
    %1548 = vmatprep.mubr.f32.mxu0 %v514
    %1549 = vmatmul.mubr.f32.gmra.mrb[0].mxu0 %v513
    %v1550 = vpop.f32.mrb[0].mxu0
    %v1551 = vadd.f32 %v1241, %v1550
    %v1552 = vpop.f32.mrb[0].mxu0
    %1553 = vmatprep.mubr.f32.mxu0 %v520
    %1554 = vmatmul.mubr.f32.gmra.mrb[0].mxu0 %v519
    %v1555 = vpop.f32.mrb[0].mxu0
    %v1556 = vadd.f32 %v1246, %v1555
    %v1557 = vpop.f32.mrb[0].mxu0
    %1558 = vmatprep.mubr.f32.mxu0 %v526
    %1559 = vmatmul.mubr.f32.gmra.mrb[0].mxu0 %v525
    %v1560 = vpop.f32.mrb[0].mxu0
    %v1561 = vadd.f32 %v1251, %v1560
    %v1562 = vpop.f32.mrb[0].mxu0
    %1563 = vmatprep.mubr.f32.mxu0 %v532
    %1564 = vmatmul.mubr.f32.gmra.mrb[0].mxu0 %v531
    %v1565 = vpop.f32.mrb[0].mxu0
    %v1566 = vadd.f32 %v1256, %v1565
    %v1567 = vpop.f32.mrb[0].mxu0
    %1568 = vmatprep.mubr.f32.mxu0 %v538
    %1569 = vmatmul.mubr.f32.gmra.mrb[0].mxu0 %v537
    %v1570 = vpop.f32.mrb[0].mxu0
    %v1571 = vadd.f32 %v1261, %v1570
    %v1572 = vpop.f32.mrb[0].mxu0
    %1573 = vmatprep.mubr.f32.mxu0 %v544
    %1574 = vmatmul.mubr.f32.gmra.mrb[0].mxu0 %v543
    %v1575 = vpop.f32.mrb[0].mxu0
    %v1576 = vadd.f32 %v1266, %v1575
    %v1577 = vpop.f32.mrb[0].mxu0
    %1578 = vmatprep.mubr.f32.mxu0 %v550
    %1579 = vmatmul.mubr.f32.gmra.mrb[0].mxu0 %v549
    %v1580 = vpop.f32.mrb[0].mxu0
    %v1581 = vadd.f32 %v1271, %v1580
    %v1582 = vpop.f32.mrb[0].mxu0
    %1583 = vdwg.mxu0
    %1584 = vst.msk [vmem:[%s12] sm:$0xff] %vm117, %v1341
    %1585 = vst.msk [vmem:[%s12 + $0x8] sm:$0xff] %vm117, %v1346
    %1586 = vst.msk [vmem:[%s12 + $0x10] sm:$0xff] %vm117, %v1351
    %1587 = vst.msk [vmem:[%s12 + $0x18] sm:$0xff] %vm117, %v1356
    %1588 = vst.msk [vmem:[%s12 + $0x20] sm:$0xff] %vm117, %v1361
    %1589 = vst.msk [vmem:[%s12 + $0x28] sm:$0xff] %vm117, %v1366
    %1590 = vst.msk [vmem:[%s12 + $0x30] sm:$0xff] %vm117, %v1371
    %1591 = vst.msk [vmem:[%s12 + $0x38] sm:$0xff] %vm117, %v1376
    %1592 = vst.msk [vmem:[%s12 + $0x40] sm:$0xff] %vm117, %v1381
    %1593 = vst.msk [vmem:[%s12 + $0x48] sm:$0xff] %vm117, %v1386
    %1594 = vst.msk [vmem:[%s12 + $0x50] sm:$0xff] %vm117, %v1391
    %1595 = vst.msk [vmem:[%s12 + $0x58] sm:$0xff] %vm117, %v1396
    %1596 = vst.msk [vmem:[%s12 + $0x60] sm:$0xff] %vm117, %v1401
    %1597 = vst.msk [vmem:[%s12 + $0x68] sm:$0xff] %vm117, %v1406
    %1598 = vst.msk [vmem:[%s12 + $0x70] sm:$0xff] %vm117, %v1411
    %1599 = vst.msk [vmem:[%s12 + $0x78] sm:$0xff] %vm117, %v1416
    %1600 = vst.msk [vmem:[%s12 + $0x80] sm:$0xff] %vm117, %v1421
    %1601 = vst.msk [vmem:[%s12 + $0x88] sm:$0xff] %vm117, %v1426
    %1602 = vst.msk [vmem:[%s12 + $0x90] sm:$0xff] %vm117, %v1431
    %1603 = vst.msk [vmem:[%s12 + $0x98] sm:$0xff] %vm117, %v1436
    %1604 = vst.msk [vmem:[%s12 + $0xa0] sm:$0xff] %vm117, %v1441
    %1605 = vst.msk [vmem:[%s12 + $0xa8] sm:$0xff] %vm117, %v1446
    %1606 = vst.msk [vmem:[%s12 + $0xb0] sm:$0xff] %vm117, %v1451
    %1607 = vst.msk [vmem:[%s12 + $0xb8] sm:$0xff] %vm117, %v1456
    %1608 = vst.msk [vmem:[%s12 + $0xc0] sm:$0xff] %vm117, %v1461
    %1609 = vst.msk [vmem:[%s12 + $0xc8] sm:$0xff] %vm117, %v1466
    %1610 = vst.msk [vmem:[%s12 + $0xd0] sm:$0xff] %vm117, %v1471
    %1611 = vst.msk [vmem:[%s12 + $0xd8] sm:$0xff] %vm117, %v1476
    %1612 = vst.msk [vmem:[%s12 + $0xe0] sm:$0xff] %vm117, %v1481
    %1613 = vst.msk [vmem:[%s12 + $0xe8] sm:$0xff] %vm117, %v1486
    %1614 = vst.msk [vmem:[%s12 + $0xf0] sm:$0xff] %vm117, %v1491
    %1615 = vst.msk [vmem:[%s12 + $0xf8] sm:$0xff] %vm117, %v1496
    %1616 = vst.msk [vmem:[%s12 + $0x100] sm:$0xff] %vm117, %v1501
    %1617 = vst.msk [vmem:[%s12 + $0x108] sm:$0xff] %vm117, %v1506
    %1618 = vst.msk [vmem:[%s12 + $0x110] sm:$0xff] %vm117, %v1511
    %1619 = vst.msk [vmem:[%s12 + $0x118] sm:$0xff] %vm117, %v1516
    %1620 = vst.msk [vmem:[%s12 + $0x120] sm:$0xff] %vm117, %v1521
    %1621 = vst.msk [vmem:[%s12 + $0x128] sm:$0xff] %vm117, %v1526
    %1622 = vst.msk [vmem:[%s12 + $0x130] sm:$0xff] %vm117, %v1531
    %1623 = vst.msk [vmem:[%s12 + $0x138] sm:$0xff] %vm117, %v1536
    %1624 = vst.msk [vmem:[%s12 + $0x140] sm:$0xff] %vm117, %v1541
    %1625 = vst.msk [vmem:[%s12 + $0x148] sm:$0xff] %vm117, %v1546
    %1626 = vst.msk [vmem:[%s12 + $0x150] sm:$0xff] %vm117, %v1551
    %1627 = vst.msk [vmem:[%s12 + $0x158] sm:$0xff] %vm117, %v1556
    %1628 = vst.msk [vmem:[%s12 + $0x160] sm:$0xff] %vm117, %v1561
    %1629 = vst.msk [vmem:[%s12 + $0x168] sm:$0xff] %vm117, %v1566
    %1630 = vst.msk [vmem:[%s12 + $0x170] sm:$0xff] %vm117, %v1571
    %1631 = vst.msk [vmem:[%s12 + $0x178] sm:$0xff] %vm117, %v1576
    %1632 = vst.msk [vmem:[%s12 + $0x180] sm:$0xff] %vm117, %v1581
    // Predicated region
    $region62: #{tpu_custom_call.1} parent=1 // pred_check
      _
    $region63: #{tpu_custom_call.1} parent=1 // pred_check_branch
      %1634 = sbr.rel (0) target = $region65
    $region64: #{tpu_custom_call.1} parent=1 // pred_region
      %s1636 = ssub.s32 256, 256
      %1637 = vsyncadd [#allocation4], %s1636
      %s1638 = sshll.u32 [#allocation13], 4
      %s1639 = int_to_ptr.vmem [resolvable:$true] %s1638
      %1644 = dma.vmem_to_hbm [thread:$0]  %s1639, 256, %s9, [#allocation4], 128, 128, 8
    $region65: #{tpu_custom_call.1} parent=1 // pred_fallthru
      _
    // Predicated region
    $region66: #{tpu_custom_call.1} parent=1 // pred_check
      _
    $region67: #{tpu_custom_call.1} parent=1 // pred_check_branch
      %1646 = sbr.rel (0) target = $region69
    $region68: #{tpu_custom_call.1} parent=1 // pred_region
      %s1648 = ssub.s32 256, 256
      %1649 = vsyncadd [#allocation15], %s1648
      %s1650 = sshll.u32 [#allocation14], 4
      %s1651 = int_to_ptr.vmem [resolvable:$true] %s1650
      %1656 = dma.vmem_to_hbm [thread:$0]  %s1651, 256, %s10, [#allocation15], 128, 128, 8
    $region69: #{tpu_custom_call.1} parent=1 // pred_fallthru
      _
    // Predicated region
    $region70: #{tpu_custom_call.1} parent=1 // pred_check
      _
    $region71: #{tpu_custom_call.1} parent=1 // pred_check_branch
      %1658 = sbr.rel (0) target = $region73
    $region72: #{tpu_custom_call.1} parent=1 // pred_region
      %s1660 = ssub.s32 256, 256
      %1661 = vsyncadd [#allocation15], %s1660
      %s1662 = sshll.u32 [#allocation16], 4
      %s1663 = int_to_ptr.vmem [resolvable:$true] %s1662
      %1668 = dma.vmem_to_hbm [thread:$0]  %s1663, 256, %s11, [#allocation15], 128, 128, 8
    $region73: #{tpu_custom_call.1} parent=1 // pred_fallthru
      _
    // Predicated region
    $region74: #{tpu_custom_call.1} parent=1 // pred_check
      _
    $region75: #{tpu_custom_call.1} parent=1 // pred_check_branch
      %1670 = sbr.rel (0) target = $region77
    $region76: #{tpu_custom_call.1} parent=1 // pred_region
      _
    $region77: #{tpu_custom_call.1} parent=1 // pred_fallthru
      _
    // Predicated region
    $region78: #{tpu_custom_call.1} parent=1 // pred_check
      _
    $region79: #{tpu_custom_call.1} parent=1 // pred_check_branch
      %1672 = sbr.rel (0) target = $region81
    $region80: #{tpu_custom_call.1} parent=1 // pred_region
      %1673 = dma.done [#allocation4], 256
    $region81: #{tpu_custom_call.1} parent=1 // pred_fallthru
      _
    // Predicated region
    $region82: #{tpu_custom_call.1} parent=1 // pred_check
      _
    $region83: #{tpu_custom_call.1} parent=1 // pred_check_branch
      %1675 = sbr.rel (0) target = $region85
    $region84: #{tpu_custom_call.1} parent=1 // pred_region
      %1676 = dma.done [#allocation15], 256
    $region85: #{tpu_custom_call.1} parent=1 // pred_fallthru
      _
    // Predicated region
    $region86: #{tpu_custom_call.1} parent=1 // pred_check
      _
    $region87: #{tpu_custom_call.1} parent=1 // pred_check_branch
      %1678 = sbr.rel (0) target = $region89
    $region88: #{tpu_custom_call.1} parent=1 // pred_region
      %1679 = dma.done [#allocation15], 256
    $region89: #{tpu_custom_call.1} parent=1 // pred_fallthru
      _
    // Predicated region
    $region90: #{tpu_custom_call.1} parent=1 // pred_check
      _
    $region91: #{tpu_custom_call.1} parent=1 // pred_check_branch
      %1681 = sbr.rel (0) target = $region93
    $region92: #{tpu_custom_call.1} parent=1 // pred_region
      _
    $region93: #{tpu_custom_call.1} parent=1 // pred_fallthru
      _
    %1682 = vsyncpa [#allocation3], 1
    %1683 = vsyncpa [#allocation6], 1
    %1684 = vsyncpa [#allocation9], 1
    %1685 = vsyncpa [#allocation12], 1
    %1686 = vsyncpa [#allocation4], 1
    %1687 = vsyncpa [#allocation15], 1

</llo_original>
